<compile_context>
chip_gen: v7x
topology: tpu7x:2x2x1
jax: 0.10.0
libtpu: 0.0.40
codegen_flags: <defaults>
</compile_context>

<pallas_src>
import math
from functools import partial

import numpy as np
import jax
import jax.numpy as jnp
from jax.experimental import pallas as pl
from jax.experimental.pallas import tpu as pltpu

C_PAD = 64         # lane padding for channels (covers max(4, 42, 64))
OUT_PAD = 128      # lane-dense classifier output slab (unmasked store)
NEG_SLOPE = 0.01   # PyTorch nn.LeakyReLU default
BN_EPS = 1e-5      # PyTorch nn.BatchNorm1d default


def _round_up(x, m):
    return ((x + m - 1) // m) * m


# ---------------------------------------------------------------------------
# Fused whole-network kernel (single grid step, everything VMEM-resident)
# ---------------------------------------------------------------------------
def _taeyeon_kernel(x_ref, w_ref, b_ref, g_ref, wc_ref, bc_ref, o_ref, pad_ref,
                    *, layer_cfg, l0, l_final, m_pad, pad_off):
    # x_ref:   (m_pad, C_PAD) f32     activations, rows = n*L0 + spatial offset
    # w_ref:   (L, 3*C_PAD, C_PAD) bf16   BN-folded conv weights (taps stacked in K)
    # b_ref:   (L, 1, C_PAD) f32          BN-folded bias
    # g_ref:   (l_final, out_rows, m_pad) bf16   classifier row gather
    # wc_ref:  (l_final, C_PAD, OUT_PAD) bf16    classifier weight per position
    # bc_ref:  (1, OUT_PAD) f32
    # o_ref:   (out_rows, OUT_PAD) f32
    # pad_ref: (m_pad + 2*pad_off, C_PAD) f32 VMEM halo scratch
    c_pad = x_ref.shape[1]

    # Zero the halo buffer once; the top/bottom borders stay zero for the whole
    # kernel and provide the conv zero-padding at the ends of the slab.
    pad_ref[...] = jnp.zeros_like(pad_ref)

    # Per-row spatial offset within its batch segment (rows are n*L0 + offset).
    rows = jax.lax.broadcasted_iota(jnp.int32, (m_pad, c_pad), 0)
    if (l0 & (l0 - 1)) == 0:
        pos = jnp.bitwise_and(rows, l0 - 1)
    else:
        pos = jax.lax.rem(rows, l0)

    act = x_ref[...]                                   # f32 (m_pad, C_PAD)
    for idx, (step, l_in, _stride) in enumerate(layer_cfg):   # static unroll
        # Store activations into the center of the halo buffer; slices at
        # +/- step give the k=0 / k=2 conv taps (zero-padded at slab ends).
        pad_ref[pl.ds(pad_off, m_pad), :] = act
        sh_m1 = pad_ref[pl.ds(pad_off - step, m_pad), :]   # act[row - step]
        sh_p1 = pad_ref[pl.ds(pad_off + step, m_pad), :]   # act[row + step]
        # Mask taps whose source crosses a batch boundary / valid-length end
        # (this reproduces Conv1d's per-sample zero padding).
        xm1 = jnp.where(pos >= step, sh_m1, 0.0)
        xp1 = jnp.where(pos < step * (l_in - 1), sh_p1, 0.0)
        # im2col in lanes: one bf16 MXU matmul per conv layer (K = 3*C_PAD).
        x3 = jnp.concatenate([xm1, act, xp1], axis=1).astype(jnp.bfloat16)
        y = jnp.dot(x3, w_ref[idx], preferred_element_type=jnp.float32)
        y = y + b_ref[idx]
        act = jnp.where(y >= 0.0, y, NEG_SLOPE * y)    # LeakyReLU
        # TODO(synk): Dropout(0.25) is identity here (eval mode); train-mode
        # dropout would need pltpu.prng_* masks.

    # Classifier: gather the l_final valid rows per sample (channel-major
    # flatten folded into per-position weight slices), then one small matmul.
    act_bf = act.astype(jnp.bfloat16)
    out = None
    for l in range(l_final):
        sel = jnp.dot(g_ref[l], act_bf, preferred_element_type=jnp.float32)
        term = jnp.dot(sel.astype(jnp.bfloat16), wc_ref[l],
                       preferred_element_type=jnp.float32)
        out = term if out is None else out + term
    o_ref[...] = out + bc_ref[...]


# ---------------------------------------------------------------------------
# Parameter construction (deterministic, synthetic) and host-side folding
# ---------------------------------------------------------------------------
def make_conv_bn_params(key, c_in, c_out):
    k1, k2, k3, k4, k5, k6 = jax.random.split(key, 6)
    w = jax.random.normal(k1, (c_out, c_in, 3), jnp.float32) * 0.1
    b = jax.random.normal(k2, (c_out,), jnp.float32) * 0.1
    gamma = 1.0 + 0.1 * jax.random.normal(k3, (c_out,), jnp.float32)
    beta = 0.1 * jax.random.normal(k4, (c_out,), jnp.float32)
    mean = 0.1 * jax.random.normal(k5, (c_out,), jnp.float32)
    var = jnp.abs(jax.random.normal(k6, (c_out,), jnp.float32)) * 0.5 + 0.5
    return (w, b, gamma, beta, mean, var)


def prepare_params(conv_params, cls_w, cls_b, *, batch, feature_len, strides):
    """Fold BN into conv weights, pad to 64 lanes, stack the 3 taps along K,
    and build the (tiny) classifier gather/weight slabs.  Heavy arrays bf16."""
    l0 = feature_len
    m_pad = _round_up(max(batch * l0, 8), 8)
    out_rows = _round_up(max(batch, 8), 8)

    # Static per-layer schedule: (input comb step, valid input length, stride).
    layer_cfg = []
    step, length = 1, l0
    for s in strides:
        layer_cfg.append((step, length, s))
        length = (length - 1) // s + 1
        step *= s
    l_final, step_final = length, step

    # --- BN-folded conv weights, taps stacked along K: (L, 3*C_PAD, C_PAD) bf16
    w_list, b_list = [], []
    for (w, b, gamma, beta, mean, var) in conv_params:
        c_out, c_in, _ = w.shape
        scale = gamma / jnp.sqrt(var + BN_EPS)                 # (Cout,)
        w_f = jnp.transpose(w, (2, 1, 0)) * scale              # (3, Cin, Cout)
        bias = (b - mean) * scale + beta                       # (Cout,)
        w_pad = jnp.zeros((3, C_PAD, C_PAD), jnp.float32)
        w_pad = w_pad.at[:, :c_in, :c_out].set(w_f)
        w_list.append(w_pad.reshape(3 * C_PAD, C_PAD))         # row = k*C_PAD+ci
        b_list.append(jnp.zeros((1, C_PAD), jnp.float32).at[0, :c_out].set(bias))
    w_all = jnp.stack(w_list, axis=0).astype(jnp.bfloat16)     # (L, 192, 64)
    b_all = jnp.stack(b_list, axis=0)                          # (L, 1, 64) f32

    # --- Classifier: undo channel-major flatten into per-position weights.
    n_out, cls_in = cls_w.shape
    c_last = conv_params[-1][0].shape[0]
    assert cls_in == c_last * l_final
    w3 = cls_w.reshape(n_out, c_last, l_final)                 # (2, C, Lf)
    wc = jnp.transpose(w3, (2, 1, 0))                          # (Lf, C, 2)
    wc_all = jnp.zeros((l_final, C_PAD, OUT_PAD), jnp.float32)
    wc_all = wc_all.at[:, :c_last, :n_out].set(wc).astype(jnp.bfloat16)
    bc_all = jnp.zeros((1, OUT_PAD), jnp.float32).at[0, :n_out].set(cls_b)

    gat = np.zeros((l_final, out_rows, m_pad), np.float32)
    for l in range(l_final):
        for n in range(batch):
            gat[l, n, n * l0 + step_final * l] = 1.0
    g_all = jnp.asarray(gat).astype(jnp.bfloat16)

    meta = dict(batch=batch, n_out=n_out, m_pad=m_pad, out_rows=out_rows,
                l0=l0, layer_cfg=tuple(layer_cfg), l_final=l_final,
                step_final=step_final)
    packed = (w_all, b_all, g_all, wc_all, bc_all)
    return packed, meta


def build_forward(packed, meta):
    w_all, b_all, g_all, wc_all, bc_all = packed
    batch, n_out = meta["batch"], meta["n_out"]
    m_pad, out_rows = meta["m_pad"], meta["out_rows"]
    pad_off = _round_up(max(s for s, _, _ in meta["layer_cfg"]), 8)
    kernel = partial(_taeyeon_kernel, layer_cfg=meta["layer_cfg"],
                     l0=meta["l0"], l_final=meta["l_final"],
                     m_pad=m_pad, pad_off=pad_off)

    def forward(x_ncl):
        n, c, length = x_ncl.shape
        # One tiny layout op at the boundary: NCL -> rows (n*L+l) x lanes (C).
        x = jnp.transpose(x_ncl, (0, 2, 1)).reshape(n * length, c)
        x_pad = jnp.zeros((m_pad, C_PAD), jnp.float32)
        x_pad = x_pad.at[:n * length, :c].set(x.astype(jnp.float32))
        out_pad = pl.pallas_call(
            kernel,
            out_shape=jax.ShapeDtypeStruct((out_rows, OUT_PAD), jnp.float32),
            grid=(1,),
            in_specs=[
                pl.BlockSpec((m_pad, C_PAD), lambda i: (0, 0)),
                pl.BlockSpec(w_all.shape, lambda i: (0, 0, 0)),
                pl.BlockSpec(b_all.shape, lambda i: (0, 0, 0)),
                pl.BlockSpec(g_all.shape, lambda i: (0, 0, 0)),
                pl.BlockSpec(wc_all.shape, lambda i: (0, 0, 0)),
                pl.BlockSpec(bc_all.shape, lambda i: (0, 0)),
            ],
            out_specs=pl.BlockSpec((out_rows, OUT_PAD), lambda i: (0, 0)),
            scratch_shapes=[pltpu.VMEM((m_pad + 2 * pad_off, C_PAD),
                                       jnp.float32)],
            compiler_params=pltpu.CompilerParams(
                dimension_semantics=("arbitrary",)),
        )(x_pad, w_all, b_all, g_all, wc_all, bc_all)
        return out_pad[:batch, :n_out]

    return jax.jit(forward)


# ---------------------------------------------------------------------------
# Plain-JAX reference of the PyTorch forward (eval mode) for a sanity check
# ---------------------------------------------------------------------------
def reference_forward(x_ncl, conv_params, cls_w, cls_b, strides):
    hi = jax.lax.Precision.HIGHEST
    x = x_ncl.astype(jnp.float32)
    for (w, b, gamma, beta, mean, var), s in zip(conv_params, strides):
        y = jax.lax.conv_general_dilated(
            x, w, window_strides=(s,), padding=((1, 1),),
            dimension_numbers=("NCH", "OIH", "NCH"), precision=hi)
        y = y + b[None, :, None]
        scale = gamma / jnp.sqrt(var + BN_EPS)
        y = (y - mean[None, :, None]) * scale[None, :, None] + beta[None, :, None]
        x = jnp.where(y >= 0.0, y, NEG_SLOPE * y)
    flat = x.reshape(x.shape[0], -1)          # channel-major flatten (N, C*L)
    return jnp.dot(flat, cls_w.T, precision=hi) + cls_b


if __name__ == "__main__":
    in_channel, feature_len, batch = 4, 16, 2
    strides = (1, 2, 1, 2, 1, 2, 1, 2)
    layer_dims = [(in_channel, 42), (42, 42), (42, 42), (42, 42),
                  (42, 42), (42, 42), (42, 64), (64, 64)]

    key = jax.random.PRNGKey(0)
    keys = jax.random.split(key, 12)
    conv_params = [make_conv_bn_params(keys[i], ci, co)
                   for i, (ci, co) in enumerate(layer_dims)]

    l_final = feature_len
    for _ in range(4):
        l_final = math.ceil(l_final / 2)
    cls_in = 64 * l_final
    cls_w = jax.random.normal(keys[8], (2, cls_in), jnp.float32) * 0.1
    cls_b = jax.random.normal(keys[9], (2,), jnp.float32) * 0.1

    x = jax.random.normal(keys[10], (batch, in_channel, feature_len), jnp.float32)

    packed, meta = prepare_params(conv_params, cls_w, cls_b,
                                  batch=batch, feature_len=feature_len,
                                  strides=strides)
    forward = build_forward(packed, meta)

    out = forward(x)
    jax.block_until_ready(out)
    assert out.shape == (batch, 2)

    # Numerical sanity check against the plain-JAX reference (bf16 MXU path).
    ref = reference_forward(x, conv_params, cls_w, cls_b, strides)
    np.testing.assert_allclose(np.asarray(out), np.asarray(ref),
                               rtol=5e-2, atol=5e-2)
    print("KERNEL_OK")
</pallas_src>

<mosaic_0001>
module attributes {stable_mosaic.version = 11 : i64} {
  func.func @_taeyeon_kernel(%arg0: i32, %arg1: memref<32x64xf32, #tpu.memory_space<vmem>>, %arg2: memref<8x192x64xbf16, #tpu.memory_space<vmem>>, %arg3: memref<8x1x64xf32, #tpu.memory_space<vmem>>, %arg4: memref<1x8x32xbf16, #tpu.memory_space<vmem>>, %arg5: memref<1x64x128xbf16, #tpu.memory_space<vmem>>, %arg6: memref<1x128xf32, #tpu.memory_space<vmem>>, %arg7: memref<8x128xf32, #tpu.memory_space<vmem>>, %arg8: memref<48x64xf32, #tpu.memory_space<vmem>>) attributes {dimension_semantics = [#tpu.dimension_semantics<arbitrary>], iteration_bounds = array<i64: 1>, scalar_prefetch = 0 : i64, scratch_operands = 1 : i64, tpu.core_type = #tpu.core_type<tc>, window_params = [{pipeline_mode = #tpu.pipeline_mode<synchronous>, transform_indices = @transform_0, window_bounds = array<i64: 32, 64>}, {pipeline_mode = #tpu.pipeline_mode<synchronous>, transform_indices = @transform_1, window_bounds = array<i64: 8, 192, 64>}, {pipeline_mode = #tpu.pipeline_mode<synchronous>, transform_indices = @transform_2, window_bounds = array<i64: 8, 1, 64>}, {pipeline_mode = #tpu.pipeline_mode<synchronous>, transform_indices = @transform_3, window_bounds = array<i64: 1, 8, 32>}, {pipeline_mode = #tpu.pipeline_mode<synchronous>, transform_indices = @transform_4, window_bounds = array<i64: 1, 64, 128>}, {pipeline_mode = #tpu.pipeline_mode<synchronous>, transform_indices = @transform_5, window_bounds = array<i64: 1, 128>}, {pipeline_mode = #tpu.pipeline_mode<synchronous>, transform_indices = @transform_6, window_bounds = array<i64: 8, 128>}]} {
    %cst = arith.constant 0.000000e+00 : f32
    %0 = vector.broadcast %cst : f32 to vector<48x64xf32>
    %c0 = arith.constant 0 : index
    %c0_0 = arith.constant 0 : index
    %1 = vector.load %arg8[%c0, %c0_0] : memref<48x64xf32, #tpu.memory_space<vmem>>, vector<48x64xf32>
    tpu.vector_store %arg8[%c0, %c0_0], %0 {strides = array<i32>} : memref<48x64xf32, #tpu.memory_space<vmem>>, vector<48x64xf32>,
    %2 = tpu.iota {dimensions = array<i32: 0>} : vector<32x64xi32>
    %c15_i32 = arith.constant 15 : i32
    %3 = vector.broadcast %c15_i32 : i32 to vector<32x64xi32>
    %4 = arith.andi %2, %3 : vector<32x64xi32>
    %c0_1 = arith.constant 0 : index
    %c0_2 = arith.constant 0 : index
    %5 = vector.load %arg1[%c0_1, %c0_2] : memref<32x64xf32, #tpu.memory_space<vmem>>, vector<32x64xf32>
    %c8 = arith.constant 8 : index
    %c0_3 = arith.constant 0 : index
    %6 = vector.load %arg8[%c8, %c0_3] : memref<48x64xf32, #tpu.memory_space<vmem>>, vector<32x64xf32>
    tpu.vector_store %arg8[%c8, %c0_3], %5 {strides = array<i32>} : memref<48x64xf32, #tpu.memory_space<vmem>>, vector<32x64xf32>,
    %c7 = arith.constant 7 : index
    %c0_4 = arith.constant 0 : index
    %7 = vector.load %arg8[%c7, %c0_4] : memref<48x64xf32, #tpu.memory_space<vmem>>, vector<32x64xf32>
    %c9 = arith.constant 9 : index
    %c0_5 = arith.constant 0 : index
    %8 = vector.load %arg8[%c9, %c0_5] : memref<48x64xf32, #tpu.memory_space<vmem>>, vector<32x64xf32>
    %c1_i32 = arith.constant 1 : i32
    %9 = vector.broadcast %c1_i32 : i32 to vector<32x64xi32>
    %10 = arith.cmpi sge, %4, %9 : vector<32x64xi32>
    %cst_6 = arith.constant 0.000000e+00 : f32
    %11 = vector.broadcast %cst_6 : f32 to vector<32x64xf32>
    %12 = arith.select %10, %7, %11 : vector<32x64xi1>, vector<32x64xf32>
    %c15_i32_7 = arith.constant 15 : i32
    %13 = vector.broadcast %c15_i32_7 : i32 to vector<32x64xi32>
    %14 = arith.cmpi slt, %4, %13 : vector<32x64xi32>
    %cst_8 = arith.constant 0.000000e+00 : f32
    %15 = vector.broadcast %cst_8 : f32 to vector<32x64xf32>
    %16 = arith.select %14, %8, %15 : vector<32x64xi1>, vector<32x64xf32>
    %17 = tpu.concatenate %12, %5, %16 in 1 : vector<32x64xf32>, vector<32x64xf32>, vector<32x64xf32> -> vector<32x192xf32>
    %18 = arith.truncf %17 : vector<32x192xf32> to vector<32x192xbf16>
    %c0_9 = arith.constant 0 : index
    %c0_10 = arith.constant 0 : index
    %c0_11 = arith.constant 0 : index
    %19 = vector.load %arg2[%c0_9, %c0_10, %c0_11] : memref<8x192x64xbf16, #tpu.memory_space<vmem>>, vector<1x192x64xbf16>
    %20 = vector.shape_cast %19 : vector<1x192x64xbf16> to vector<192x64xbf16>
    %cst_12 = arith.constant dense<0.000000e+00> : vector<32x64xf32>
    %21 = tpu.matmul %18, %20, %cst_12 {dimension_numbers = #tpu.dot_dimension_numbers<[1], [0], [0], [1], [0, 0, 1, 1], [], []>} : vector<32x192xbf16>, vector<192x64xbf16>, vector<32x64xf32> -> vector<32x64xf32>
    %c0_13 = arith.constant 0 : index
    %c0_14 = arith.constant 0 : index
    %c0_15 = arith.constant 0 : index
    %22 = vector.load %arg3[%c0_13, %c0_14, %c0_15] : memref<8x1x64xf32, #tpu.memory_space<vmem>>, vector<1x1x64xf32>
    %23 = vector.shape_cast %22 : vector<1x1x64xf32> to vector<1x64xf32>
    %24 = vector.broadcast %23 : vector<1x64xf32> to vector<32x64xf32>
    %25 = arith.addf %21, %24 : vector<32x64xf32>
    %cst_16 = arith.constant 0.000000e+00 : f32
    %26 = vector.broadcast %cst_16 : f32 to vector<32x64xf32>
    %27 = arith.cmpf oge, %25, %26 : vector<32x64xf32>
    %cst_17 = arith.constant 0.00999999977 : f32
    %28 = vector.broadcast %cst_17 : f32 to vector<32x64xf32>
    %29 = arith.mulf %28, %25 : vector<32x64xf32>
    %30 = arith.select %27, %25, %29 : vector<32x64xi1>, vector<32x64xf32>
    %c8_18 = arith.constant 8 : index
    %c0_19 = arith.constant 0 : index
    %31 = vector.load %arg8[%c8_18, %c0_19] : memref<48x64xf32, #tpu.memory_space<vmem>>, vector<32x64xf32>
    tpu.vector_store %arg8[%c8_18, %c0_19], %30 {strides = array<i32>} : memref<48x64xf32, #tpu.memory_space<vmem>>, vector<32x64xf32>,
    %c7_20 = arith.constant 7 : index
    %c0_21 = arith.constant 0 : index
    %32 = vector.load %arg8[%c7_20, %c0_21] : memref<48x64xf32, #tpu.memory_space<vmem>>, vector<32x64xf32>
    %c9_22 = arith.constant 9 : index
    %c0_23 = arith.constant 0 : index
    %33 = vector.load %arg8[%c9_22, %c0_23] : memref<48x64xf32, #tpu.memory_space<vmem>>, vector<32x64xf32>
    %c1_i32_24 = arith.constant 1 : i32
    %34 = vector.broadcast %c1_i32_24 : i32 to vector<32x64xi32>
    %35 = arith.cmpi sge, %4, %34 : vector<32x64xi32>
    %cst_25 = arith.constant 0.000000e+00 : f32
    %36 = vector.broadcast %cst_25 : f32 to vector<32x64xf32>
    %37 = arith.select %35, %32, %36 : vector<32x64xi1>, vector<32x64xf32>
    %c15_i32_26 = arith.constant 15 : i32
    %38 = vector.broadcast %c15_i32_26 : i32 to vector<32x64xi32>
    %39 = arith.cmpi slt, %4, %38 : vector<32x64xi32>
    %cst_27 = arith.constant 0.000000e+00 : f32
    %40 = vector.broadcast %cst_27 : f32 to vector<32x64xf32>
    %41 = arith.select %39, %33, %40 : vector<32x64xi1>, vector<32x64xf32>
    %42 = tpu.concatenate %37, %30, %41 in 1 : vector<32x64xf32>, vector<32x64xf32>, vector<32x64xf32> -> vector<32x192xf32>
    %43 = arith.truncf %42 : vector<32x192xf32> to vector<32x192xbf16>
    %c1 = arith.constant 1 : index
    %c0_28 = arith.constant 0 : index
    %c0_29 = arith.constant 0 : index
    %44 = vector.load %arg2[%c1, %c0_28, %c0_29] : memref<8x192x64xbf16, #tpu.memory_space<vmem>>, vector<1x192x64xbf16>
    %45 = vector.shape_cast %44 : vector<1x192x64xbf16> to vector<192x64xbf16>
    %cst_30 = arith.constant dense<0.000000e+00> : vector<32x64xf32>
    %46 = tpu.matmul %43, %45, %cst_30 {dimension_numbers = #tpu.dot_dimension_numbers<[1], [0], [0], [1], [0, 0, 1, 1], [], []>} : vector<32x192xbf16>, vector<192x64xbf16>, vector<32x64xf32> -> vector<32x64xf32>
    %c1_31 = arith.constant 1 : index
    %c0_32 = arith.constant 0 : index
    %c0_33 = arith.constant 0 : index
    %47 = vector.load %arg3[%c1_31, %c0_32, %c0_33] : memref<8x1x64xf32, #tpu.memory_space<vmem>>, vector<1x1x64xf32>
    %48 = vector.shape_cast %47 : vector<1x1x64xf32> to vector<1x64xf32>
    %49 = vector.broadcast %48 : vector<1x64xf32> to vector<32x64xf32>
    %50 = arith.addf %46, %49 : vector<32x64xf32>
    %cst_34 = arith.constant 0.000000e+00 : f32
    %51 = vector.broadcast %cst_34 : f32 to vector<32x64xf32>
    %52 = arith.cmpf oge, %50, %51 : vector<32x64xf32>
    %cst_35 = arith.constant 0.00999999977 : f32
    %53 = vector.broadcast %cst_35 : f32 to vector<32x64xf32>
    %54 = arith.mulf %53, %50 : vector<32x64xf32>
    %55 = arith.select %52, %50, %54 : vector<32x64xi1>, vector<32x64xf32>
    %c8_36 = arith.constant 8 : index
    %c0_37 = arith.constant 0 : index
    %56 = vector.load %arg8[%c8_36, %c0_37] : memref<48x64xf32, #tpu.memory_space<vmem>>, vector<32x64xf32>
    tpu.vector_store %arg8[%c8_36, %c0_37], %55 {strides = array<i32>} : memref<48x64xf32, #tpu.memory_space<vmem>>, vector<32x64xf32>,
    %c6 = arith.constant 6 : index
    %c0_38 = arith.constant 0 : index
    %57 = vector.load %arg8[%c6, %c0_38] : memref<48x64xf32, #tpu.memory_space<vmem>>, vector<32x64xf32>
    %c10 = arith.constant 10 : index
    %c0_39 = arith.constant 0 : index
    %58 = vector.load %arg8[%c10, %c0_39] : memref<48x64xf32, #tpu.memory_space<vmem>>, vector<32x64xf32>
    %c2_i32 = arith.constant 2 : i32
    %59 = vector.broadcast %c2_i32 : i32 to vector<32x64xi32>
    %60 = arith.cmpi sge, %4, %59 : vector<32x64xi32>
    %cst_40 = arith.constant 0.000000e+00 : f32
    %61 = vector.broadcast %cst_40 : f32 to vector<32x64xf32>
    %62 = arith.select %60, %57, %61 : vector<32x64xi1>, vector<32x64xf32>
    %c14_i32 = arith.constant 14 : i32
    %63 = vector.broadcast %c14_i32 : i32 to vector<32x64xi32>
    %64 = arith.cmpi slt, %4, %63 : vector<32x64xi32>
    %cst_41 = arith.constant 0.000000e+00 : f32
    %65 = vector.broadcast %cst_41 : f32 to vector<32x64xf32>
    %66 = arith.select %64, %58, %65 : vector<32x64xi1>, vector<32x64xf32>
    %67 = tpu.concatenate %62, %55, %66 in 1 : vector<32x64xf32>, vector<32x64xf32>, vector<32x64xf32> -> vector<32x192xf32>
    %68 = arith.truncf %67 : vector<32x192xf32> to vector<32x192xbf16>
    %c2 = arith.constant 2 : index
    %c0_42 = arith.constant 0 : index
    %c0_43 = arith.constant 0 : index
    %69 = vector.load %arg2[%c2, %c0_42, %c0_43] : memref<8x192x64xbf16, #tpu.memory_space<vmem>>, vector<1x192x64xbf16>
    %70 = vector.shape_cast %69 : vector<1x192x64xbf16> to vector<192x64xbf16>
    %cst_44 = arith.constant dense<0.000000e+00> : vector<32x64xf32>
    %71 = tpu.matmul %68, %70, %cst_44 {dimension_numbers = #tpu.dot_dimension_numbers<[1], [0], [0], [1], [0, 0, 1, 1], [], []>} : vector<32x192xbf16>, vector<192x64xbf16>, vector<32x64xf32> -> vector<32x64xf32>
    %c2_45 = arith.constant 2 : index
    %c0_46 = arith.constant 0 : index
    %c0_47 = arith.constant 0 : index
    %72 = vector.load %arg3[%c2_45, %c0_46, %c0_47] : memref<8x1x64xf32, #tpu.memory_space<vmem>>, vector<1x1x64xf32>
    %73 = vector.shape_cast %72 : vector<1x1x64xf32> to vector<1x64xf32>
    %74 = vector.broadcast %73 : vector<1x64xf32> to vector<32x64xf32>
    %75 = arith.addf %71, %74 : vector<32x64xf32>
    %cst_48 = arith.constant 0.000000e+00 : f32
    %76 = vector.broadcast %cst_48 : f32 to vector<32x64xf32>
    %77 = arith.cmpf oge, %75, %76 : vector<32x64xf32>
    %cst_49 = arith.constant 0.00999999977 : f32
    %78 = vector.broadcast %cst_49 : f32 to vector<32x64xf32>
    %79 = arith.mulf %78, %75 : vector<32x64xf32>
    %80 = arith.select %77, %75, %79 : vector<32x64xi1>, vector<32x64xf32>
    %c8_50 = arith.constant 8 : index
    %c0_51 = arith.constant 0 : index
    %81 = vector.load %arg8[%c8_50, %c0_51] : memref<48x64xf32, #tpu.memory_space<vmem>>, vector<32x64xf32>
    tpu.vector_store %arg8[%c8_50, %c0_51], %80 {strides = array<i32>} : memref<48x64xf32, #tpu.memory_space<vmem>>, vector<32x64xf32>,
    %c6_52 = arith.constant 6 : index
    %c0_53 = arith.constant 0 : index
    %82 = vector.load %arg8[%c6_52, %c0_53] : memref<48x64xf32, #tpu.memory_space<vmem>>, vector<32x64xf32>
    %c10_54 = arith.constant 10 : index
    %c0_55 = arith.constant 0 : index
    %83 = vector.load %arg8[%c10_54, %c0_55] : memref<48x64xf32, #tpu.memory_space<vmem>>, vector<32x64xf32>
    %c2_i32_56 = arith.constant 2 : i32
    %84 = vector.broadcast %c2_i32_56 : i32 to vector<32x64xi32>
    %85 = arith.cmpi sge, %4, %84 : vector<32x64xi32>
    %cst_57 = arith.constant 0.000000e+00 : f32
    %86 = vector.broadcast %cst_57 : f32 to vector<32x64xf32>
    %87 = arith.select %85, %82, %86 : vector<32x64xi1>, vector<32x64xf32>
    %c14_i32_58 = arith.constant 14 : i32
    %88 = vector.broadcast %c14_i32_58 : i32 to vector<32x64xi32>
    %89 = arith.cmpi slt, %4, %88 : vector<32x64xi32>
    %cst_59 = arith.constant 0.000000e+00 : f32
    %90 = vector.broadcast %cst_59 : f32 to vector<32x64xf32>
    %91 = arith.select %89, %83, %90 : vector<32x64xi1>, vector<32x64xf32>
    %92 = tpu.concatenate %87, %80, %91 in 1 : vector<32x64xf32>, vector<32x64xf32>, vector<32x64xf32> -> vector<32x192xf32>
    %93 = arith.truncf %92 : vector<32x192xf32> to vector<32x192xbf16>
    %c3 = arith.constant 3 : index
    %c0_60 = arith.constant 0 : index
    %c0_61 = arith.constant 0 : index
    %94 = vector.load %arg2[%c3, %c0_60, %c0_61] : memref<8x192x64xbf16, #tpu.memory_space<vmem>>, vector<1x192x64xbf16>
    %95 = vector.shape_cast %94 : vector<1x192x64xbf16> to vector<192x64xbf16>
    %cst_62 = arith.constant dense<0.000000e+00> : vector<32x64xf32>
    %96 = tpu.matmul %93, %95, %cst_62 {dimension_numbers = #tpu.dot_dimension_numbers<[1], [0], [0], [1], [0, 0, 1, 1], [], []>} : vector<32x192xbf16>, vector<192x64xbf16>, vector<32x64xf32> -> vector<32x64xf32>
    %c3_63 = arith.constant 3 : index
    %c0_64 = arith.constant 0 : index
    %c0_65 = arith.constant 0 : index
    %97 = vector.load %arg3[%c3_63, %c0_64, %c0_65] : memref<8x1x64xf32, #tpu.memory_space<vmem>>, vector<1x1x64xf32>
    %98 = vector.shape_cast %97 : vector<1x1x64xf32> to vector<1x64xf32>
    %99 = vector.broadcast %98 : vector<1x64xf32> to vector<32x64xf32>
    %100 = arith.addf %96, %99 : vector<32x64xf32>
    %cst_66 = arith.constant 0.000000e+00 : f32
    %101 = vector.broadcast %cst_66 : f32 to vector<32x64xf32>
    %102 = arith.cmpf oge, %100, %101 : vector<32x64xf32>
    %cst_67 = arith.constant 0.00999999977 : f32
    %103 = vector.broadcast %cst_67 : f32 to vector<32x64xf32>
    %104 = arith.mulf %103, %100 : vector<32x64xf32>
    %105 = arith.select %102, %100, %104 : vector<32x64xi1>, vector<32x64xf32>
    %c8_68 = arith.constant 8 : index
    %c0_69 = arith.constant 0 : index
    %106 = vector.load %arg8[%c8_68, %c0_69] : memref<48x64xf32, #tpu.memory_space<vmem>>, vector<32x64xf32>
    tpu.vector_store %arg8[%c8_68, %c0_69], %105 {strides = array<i32>} : memref<48x64xf32, #tpu.memory_space<vmem>>, vector<32x64xf32>,
    %c4 = arith.constant 4 : index
    %c0_70 = arith.constant 0 : index
    %107 = vector.load %arg8[%c4, %c0_70] : memref<48x64xf32, #tpu.memory_space<vmem>>, vector<32x64xf32>
    %c12 = arith.constant 12 : index
    %c0_71 = arith.constant 0 : index
    %108 = vector.load %arg8[%c12, %c0_71] : memref<48x64xf32, #tpu.memory_space<vmem>>, vector<32x64xf32>
    %c4_i32 = arith.constant 4 : i32
    %109 = vector.broadcast %c4_i32 : i32 to vector<32x64xi32>
    %110 = arith.cmpi sge, %4, %109 : vector<32x64xi32>
    %cst_72 = arith.constant 0.000000e+00 : f32
    %111 = vector.broadcast %cst_72 : f32 to vector<32x64xf32>
    %112 = arith.select %110, %107, %111 : vector<32x64xi1>, vector<32x64xf32>
    %c12_i32 = arith.constant 12 : i32
    %113 = vector.broadcast %c12_i32 : i32 to vector<32x64xi32>
    %114 = arith.cmpi slt, %4, %113 : vector<32x64xi32>
    %cst_73 = arith.constant 0.000000e+00 : f32
    %115 = vector.broadcast %cst_73 : f32 to vector<32x64xf32>
    %116 = arith.select %114, %108, %115 : vector<32x64xi1>, vector<32x64xf32>
    %117 = tpu.concatenate %112, %105, %116 in 1 : vector<32x64xf32>, vector<32x64xf32>, vector<32x64xf32> -> vector<32x192xf32>
    %118 = arith.truncf %117 : vector<32x192xf32> to vector<32x192xbf16>
    %c4_74 = arith.constant 4 : index
    %c0_75 = arith.constant 0 : index
    %c0_76 = arith.constant 0 : index
    %119 = vector.load %arg2[%c4_74, %c0_75, %c0_76] : memref<8x192x64xbf16, #tpu.memory_space<vmem>>, vector<1x192x64xbf16>
    %120 = vector.shape_cast %119 : vector<1x192x64xbf16> to vector<192x64xbf16>
    %cst_77 = arith.constant dense<0.000000e+00> : vector<32x64xf32>
    %121 = tpu.matmul %118, %120, %cst_77 {dimension_numbers = #tpu.dot_dimension_numbers<[1], [0], [0], [1], [0, 0, 1, 1], [], []>} : vector<32x192xbf16>, vector<192x64xbf16>, vector<32x64xf32> -> vector<32x64xf32>
    %c4_78 = arith.constant 4 : index
    %c0_79 = arith.constant 0 : index
    %c0_80 = arith.constant 0 : index
    %122 = vector.load %arg3[%c4_78, %c0_79, %c0_80] : memref<8x1x64xf32, #tpu.memory_space<vmem>>, vector<1x1x64xf32>
    %123 = vector.shape_cast %122 : vector<1x1x64xf32> to vector<1x64xf32>
    %124 = vector.broadcast %123 : vector<1x64xf32> to vector<32x64xf32>
    %125 = arith.addf %121, %124 : vector<32x64xf32>
    %cst_81 = arith.constant 0.000000e+00 : f32
    %126 = vector.broadcast %cst_81 : f32 to vector<32x64xf32>
    %127 = arith.cmpf oge, %125, %126 : vector<32x64xf32>
    %cst_82 = arith.constant 0.00999999977 : f32
    %128 = vector.broadcast %cst_82 : f32 to vector<32x64xf32>
    %129 = arith.mulf %128, %125 : vector<32x64xf32>
    %130 = arith.select %127, %125, %129 : vector<32x64xi1>, vector<32x64xf32>
    %c8_83 = arith.constant 8 : index
    %c0_84 = arith.constant 0 : index
    %131 = vector.load %arg8[%c8_83, %c0_84] : memref<48x64xf32, #tpu.memory_space<vmem>>, vector<32x64xf32>
    tpu.vector_store %arg8[%c8_83, %c0_84], %130 {strides = array<i32>} : memref<48x64xf32, #tpu.memory_space<vmem>>, vector<32x64xf32>,
    %c4_85 = arith.constant 4 : index
    %c0_86 = arith.constant 0 : index
    %132 = vector.load %arg8[%c4_85, %c0_86] : memref<48x64xf32, #tpu.memory_space<vmem>>, vector<32x64xf32>
    %c12_87 = arith.constant 12 : index
    %c0_88 = arith.constant 0 : index
    %133 = vector.load %arg8[%c12_87, %c0_88] : memref<48x64xf32, #tpu.memory_space<vmem>>, vector<32x64xf32>
    %c4_i32_89 = arith.constant 4 : i32
    %134 = vector.broadcast %c4_i32_89 : i32 to vector<32x64xi32>
    %135 = arith.cmpi sge, %4, %134 : vector<32x64xi32>
    %cst_90 = arith.constant 0.000000e+00 : f32
    %136 = vector.broadcast %cst_90 : f32 to vector<32x64xf32>
    %137 = arith.select %135, %132, %136 : vector<32x64xi1>, vector<32x64xf32>
    %c12_i32_91 = arith.constant 12 : i32
    %138 = vector.broadcast %c12_i32_91 : i32 to vector<32x64xi32>
    %139 = arith.cmpi slt, %4, %138 : vector<32x64xi32>
    %cst_92 = arith.constant 0.000000e+00 : f32
    %140 = vector.broadcast %cst_92 : f32 to vector<32x64xf32>
    %141 = arith.select %139, %133, %140 : vector<32x64xi1>, vector<32x64xf32>
    %142 = tpu.concatenate %137, %130, %141 in 1 : vector<32x64xf32>, vector<32x64xf32>, vector<32x64xf32> -> vector<32x192xf32>
    %143 = arith.truncf %142 : vector<32x192xf32> to vector<32x192xbf16>
    %c5 = arith.constant 5 : index
    %c0_93 = arith.constant 0 : index
    %c0_94 = arith.constant 0 : index
    %144 = vector.load %arg2[%c5, %c0_93, %c0_94] : memref<8x192x64xbf16, #tpu.memory_space<vmem>>, vector<1x192x64xbf16>
    %145 = vector.shape_cast %144 : vector<1x192x64xbf16> to vector<192x64xbf16>
    %cst_95 = arith.constant dense<0.000000e+00> : vector<32x64xf32>
    %146 = tpu.matmul %143, %145, %cst_95 {dimension_numbers = #tpu.dot_dimension_numbers<[1], [0], [0], [1], [0, 0, 1, 1], [], []>} : vector<32x192xbf16>, vector<192x64xbf16>, vector<32x64xf32> -> vector<32x64xf32>
    %c5_96 = arith.constant 5 : index
    %c0_97 = arith.constant 0 : index
    %c0_98 = arith.constant 0 : index
    %147 = vector.load %arg3[%c5_96, %c0_97, %c0_98] : memref<8x1x64xf32, #tpu.memory_space<vmem>>, vector<1x1x64xf32>
    %148 = vector.shape_cast %147 : vector<1x1x64xf32> to vector<1x64xf32>
    %149 = vector.broadcast %148 : vector<1x64xf32> to vector<32x64xf32>
    %150 = arith.addf %146, %149 : vector<32x64xf32>
    %cst_99 = arith.constant 0.000000e+00 : f32
    %151 = vector.broadcast %cst_99 : f32 to vector<32x64xf32>
    %152 = arith.cmpf oge, %150, %151 : vector<32x64xf32>
    %cst_100 = arith.constant 0.00999999977 : f32
    %153 = vector.broadcast %cst_100 : f32 to vector<32x64xf32>
    %154 = arith.mulf %153, %150 : vector<32x64xf32>
    %155 = arith.select %152, %150, %154 : vector<32x64xi1>, vector<32x64xf32>
    %c8_101 = arith.constant 8 : index
    %c0_102 = arith.constant 0 : index
    %156 = vector.load %arg8[%c8_101, %c0_102] : memref<48x64xf32, #tpu.memory_space<vmem>>, vector<32x64xf32>
    tpu.vector_store %arg8[%c8_101, %c0_102], %155 {strides = array<i32>} : memref<48x64xf32, #tpu.memory_space<vmem>>, vector<32x64xf32>,
    %c0_103 = arith.constant 0 : index
    %c0_104 = arith.constant 0 : index
    %157 = vector.load %arg8[%c0_103, %c0_104] : memref<48x64xf32, #tpu.memory_space<vmem>>, vector<32x64xf32>
    %c16 = arith.constant 16 : index
    %c0_105 = arith.constant 0 : index
    %158 = vector.load %arg8[%c16, %c0_105] : memref<48x64xf32, #tpu.memory_space<vmem>>, vector<32x64xf32>
    %c8_i32 = arith.constant 8 : i32
    %159 = vector.broadcast %c8_i32 : i32 to vector<32x64xi32>
    %160 = arith.cmpi sge, %4, %159 : vector<32x64xi32>
    %cst_106 = arith.constant 0.000000e+00 : f32
    %161 = vector.broadcast %cst_106 : f32 to vector<32x64xf32>
    %162 = arith.select %160, %157, %161 : vector<32x64xi1>, vector<32x64xf32>
    %c8_i32_107 = arith.constant 8 : i32
    %163 = vector.broadcast %c8_i32_107 : i32 to vector<32x64xi32>
    %164 = arith.cmpi slt, %4, %163 : vector<32x64xi32>
    %cst_108 = arith.constant 0.000000e+00 : f32
    %165 = vector.broadcast %cst_108 : f32 to vector<32x64xf32>
    %166 = arith.select %164, %158, %165 : vector<32x64xi1>, vector<32x64xf32>
    %167 = tpu.concatenate %162, %155, %166 in 1 : vector<32x64xf32>, vector<32x64xf32>, vector<32x64xf32> -> vector<32x192xf32>
    %168 = arith.truncf %167 : vector<32x192xf32> to vector<32x192xbf16>
    %c6_109 = arith.constant 6 : index
    %c0_110 = arith.constant 0 : index
    %c0_111 = arith.constant 0 : index
    %169 = vector.load %arg2[%c6_109, %c0_110, %c0_111] : memref<8x192x64xbf16, #tpu.memory_space<vmem>>, vector<1x192x64xbf16>
    %170 = vector.shape_cast %169 : vector<1x192x64xbf16> to vector<192x64xbf16>
    %cst_112 = arith.constant dense<0.000000e+00> : vector<32x64xf32>
    %171 = tpu.matmul %168, %170, %cst_112 {dimension_numbers = #tpu.dot_dimension_numbers<[1], [0], [0], [1], [0, 0, 1, 1], [], []>} : vector<32x192xbf16>, vector<192x64xbf16>, vector<32x64xf32> -> vector<32x64xf32>
    %c6_113 = arith.constant 6 : index
    %c0_114 = arith.constant 0 : index
    %c0_115 = arith.constant 0 : index
    %172 = vector.load %arg3[%c6_113, %c0_114, %c0_115] : memref<8x1x64xf32, #tpu.memory_space<vmem>>, vector<1x1x64xf32>
    %173 = vector.shape_cast %172 : vector<1x1x64xf32> to vector<1x64xf32>
    %174 = vector.broadcast %173 : vector<1x64xf32> to vector<32x64xf32>
    %175 = arith.addf %171, %174 : vector<32x64xf32>
    %cst_116 = arith.constant 0.000000e+00 : f32
    %176 = vector.broadcast %cst_116 : f32 to vector<32x64xf32>
    %177 = arith.cmpf oge, %175, %176 : vector<32x64xf32>
    %cst_117 = arith.constant 0.00999999977 : f32
    %178 = vector.broadcast %cst_117 : f32 to vector<32x64xf32>
    %179 = arith.mulf %178, %175 : vector<32x64xf32>
    %180 = arith.select %177, %175, %179 : vector<32x64xi1>, vector<32x64xf32>
    %c8_118 = arith.constant 8 : index
    %c0_119 = arith.constant 0 : index
    %181 = vector.load %arg8[%c8_118, %c0_119] : memref<48x64xf32, #tpu.memory_space<vmem>>, vector<32x64xf32>
    tpu.vector_store %arg8[%c8_118, %c0_119], %180 {strides = array<i32>} : memref<48x64xf32, #tpu.memory_space<vmem>>, vector<32x64xf32>,
    %c0_120 = arith.constant 0 : index
    %c0_121 = arith.constant 0 : index
    %182 = vector.load %arg8[%c0_120, %c0_121] : memref<48x64xf32, #tpu.memory_space<vmem>>, vector<32x64xf32>
    %c16_122 = arith.constant 16 : index
    %c0_123 = arith.constant 0 : index
    %183 = vector.load %arg8[%c16_122, %c0_123] : memref<48x64xf32, #tpu.memory_space<vmem>>, vector<32x64xf32>
    %c8_i32_124 = arith.constant 8 : i32
    %184 = vector.broadcast %c8_i32_124 : i32 to vector<32x64xi32>
    %185 = arith.cmpi sge, %4, %184 : vector<32x64xi32>
    %cst_125 = arith.constant 0.000000e+00 : f32
    %186 = vector.broadcast %cst_125 : f32 to vector<32x64xf32>
    %187 = arith.select %185, %182, %186 : vector<32x64xi1>, vector<32x64xf32>
    %c8_i32_126 = arith.constant 8 : i32
    %188 = vector.broadcast %c8_i32_126 : i32 to vector<32x64xi32>
    %189 = arith.cmpi slt, %4, %188 : vector<32x64xi32>
    %cst_127 = arith.constant 0.000000e+00 : f32
    %190 = vector.broadcast %cst_127 : f32 to vector<32x64xf32>
    %191 = arith.select %189, %183, %190 : vector<32x64xi1>, vector<32x64xf32>
    %192 = tpu.concatenate %187, %180, %191 in 1 : vector<32x64xf32>, vector<32x64xf32>, vector<32x64xf32> -> vector<32x192xf32>
    %193 = arith.truncf %192 : vector<32x192xf32> to vector<32x192xbf16>
    %c7_128 = arith.constant 7 : index
    %c0_129 = arith.constant 0 : index
    %c0_130 = arith.constant 0 : index
    %194 = vector.load %arg2[%c7_128, %c0_129, %c0_130] : memref<8x192x64xbf16, #tpu.memory_space<vmem>>, vector<1x192x64xbf16>
    %195 = vector.shape_cast %194 : vector<1x192x64xbf16> to vector<192x64xbf16>
    %cst_131 = arith.constant dense<0.000000e+00> : vector<32x64xf32>
    %196 = tpu.matmul %193, %195, %cst_131 {dimension_numbers = #tpu.dot_dimension_numbers<[1], [0], [0], [1], [0, 0, 1, 1], [], []>} : vector<32x192xbf16>, vector<192x64xbf16>, vector<32x64xf32> -> vector<32x64xf32>
    %c7_132 = arith.constant 7 : index
    %c0_133 = arith.constant 0 : index
    %c0_134 = arith.constant 0 : index
    %197 = vector.load %arg3[%c7_132, %c0_133, %c0_134] : memref<8x1x64xf32, #tpu.memory_space<vmem>>, vector<1x1x64xf32>
    %198 = vector.shape_cast %197 : vector<1x1x64xf32> to vector<1x64xf32>
    %199 = vector.broadcast %198 : vector<1x64xf32> to vector<32x64xf32>
    %200 = arith.addf %196, %199 : vector<32x64xf32>
    %cst_135 = arith.constant 0.000000e+00 : f32
    %201 = vector.broadcast %cst_135 : f32 to vector<32x64xf32>
    %202 = arith.cmpf oge, %200, %201 : vector<32x64xf32>
    %cst_136 = arith.constant 0.00999999977 : f32
    %203 = vector.broadcast %cst_136 : f32 to vector<32x64xf32>
    %204 = arith.mulf %203, %200 : vector<32x64xf32>
    %205 = arith.select %202, %200, %204 : vector<32x64xi1>, vector<32x64xf32>
    %206 = arith.truncf %205 : vector<32x64xf32> to vector<32x64xbf16>
    %c0_137 = arith.constant 0 : index
    %c0_138 = arith.constant 0 : index
    %c0_139 = arith.constant 0 : index
    %207 = vector.load %arg4[%c0_137, %c0_138, %c0_139] : memref<1x8x32xbf16, #tpu.memory_space<vmem>>, vector<1x8x32xbf16>
    %208 = vector.shape_cast %207 : vector<1x8x32xbf16> to vector<8x32xbf16>
    %cst_140 = arith.constant dense<0.000000e+00> : vector<8x64xf32>
    %209 = tpu.matmul %208, %206, %cst_140 {dimension_numbers = #tpu.dot_dimension_numbers<[1], [0], [0], [1], [0, 0, 1, 1], [], []>} : vector<8x32xbf16>, vector<32x64xbf16>, vector<8x64xf32> -> vector<8x64xf32>
    %210 = arith.truncf %209 : vector<8x64xf32> to vector<8x64xbf16>
    %c0_141 = arith.constant 0 : index
    %c0_142 = arith.constant 0 : index
    %c0_143 = arith.constant 0 : index
    %211 = vector.load %arg5[%c0_141, %c0_142, %c0_143] : memref<1x64x128xbf16, #tpu.memory_space<vmem>>, vector<1x64x128xbf16>
    %212 = vector.shape_cast %211 : vector<1x64x128xbf16> to vector<64x128xbf16>
    %cst_144 = arith.constant dense<0.000000e+00> : vector<8x128xf32>
    %213 = tpu.matmul %210, %212, %cst_144 {dimension_numbers = #tpu.dot_dimension_numbers<[1], [0], [0], [1], [0, 0, 1, 1], [], []>} : vector<8x64xbf16>, vector<64x128xbf16>, vector<8x128xf32> -> vector<8x128xf32>
    %c0_145 = arith.constant 0 : index
    %c0_146 = arith.constant 0 : index
    %214 = vector.load %arg6[%c0_145, %c0_146] : memref<1x128xf32, #tpu.memory_space<vmem>>, vector<1x128xf32>
    %215 = vector.broadcast %214 : vector<1x128xf32> to vector<8x128xf32>
    %216 = arith.addf %213, %215 : vector<8x128xf32>
    %c0_147 = arith.constant 0 : index
    %c0_148 = arith.constant 0 : index
    %217 = vector.load %arg7[%c0_147, %c0_148] : memref<8x128xf32, #tpu.memory_space<vmem>>, vector<8x128xf32>
    tpu.vector_store %arg7[%c0_147, %c0_148], %216 {strides = array<i32>} : memref<8x128xf32, #tpu.memory_space<vmem>>, vector<8x128xf32>,
    return
  }
  func.func @transform_0(%arg0: i32) -> (i32, i32) {
    %c0_i32 = arith.constant 0 : i32
    %c0_i32_0 = arith.constant 0 : i32
    %c0_i32_1 = arith.constant 0 : i32
    return %c0_i32, %c0_i32_0 : i32, i32
  }
  func.func @transform_1(%arg0: i32) -> (i32, i32, i32) {
    %c0_i32 = arith.constant 0 : i32
    %c0_i32_0 = arith.constant 0 : i32
    %c0_i32_1 = arith.constant 0 : i32
    %c0_i32_2 = arith.constant 0 : i32
    return %c0_i32, %c0_i32_0, %c0_i32_1 : i32, i32, i32
  }
  func.func @transform_2(%arg0: i32) -> (i32, i32, i32) {
    %c0_i32 = arith.constant 0 : i32
    %c0_i32_0 = arith.constant 0 : i32
    %c0_i32_1 = arith.constant 0 : i32
    %c0_i32_2 = arith.constant 0 : i32
    return %c0_i32, %c0_i32_0, %c0_i32_1 : i32, i32, i32
  }
  func.func @transform_3(%arg0: i32) -> (i32, i32, i32) {
    %c0_i32 = arith.constant 0 : i32
    %c0_i32_0 = arith.constant 0 : i32
    %c0_i32_1 = arith.constant 0 : i32
    %c0_i32_2 = arith.constant 0 : i32
    return %c0_i32, %c0_i32_0, %c0_i32_1 : i32, i32, i32
  }
  func.func @transform_4(%arg0: i32) -> (i32, i32, i32) {
    %c0_i32 = arith.constant 0 : i32
    %c0_i32_0 = arith.constant 0 : i32
    %c0_i32_1 = arith.constant 0 : i32
    %c0_i32_2 = arith.constant 0 : i32
    return %c0_i32, %c0_i32_0, %c0_i32_1 : i32, i32, i32
  }
  func.func @transform_5(%arg0: i32) -> (i32, i32) {
    %c0_i32 = arith.constant 0 : i32
    %c0_i32_0 = arith.constant 0 : i32
    %c0_i32_1 = arith.constant 0 : i32
    return %c0_i32, %c0_i32_0 : i32, i32
  }
  func.func @transform_6(%arg0: i32) -> (i32, i32) {
    %c0_i32 = arith.constant 0 : i32
    %c0_i32_0 = arith.constant 0 : i32
    %c0_i32_1 = arith.constant 0 : i32
    return %c0_i32, %c0_i32_0 : i32, i32
  }
}

</mosaic_0001>

<llo_original>
// kernel: forward.1
$region0: #{forward.1}
  #allocation0 [shape = 'u32[]', space=smem, size = 0x4, offset = 0x4, fixed_abs, tag = 'smem constant byte address 0x4 - core index']
  #allocation1 [shape = 'u32[144,128]{1,0:T(1,128)}', space=vmem, size = 0x12000, scoped, tag = 'internal scratch']
  #allocation2 [shape = 'f32[48,64]{1,0:T(8,128)}', space=vmem, size = 0x6000, scoped, tag = 'scratch operand']
  %s0 = inlined_call_operand.vmem [shape: f32[32,64], index: 0, kind: input, shape index: {}]
  %s1 = inlined_call_operand.hbm [shape: bf16[8,192,64], index: 1, kind: input, shape index: {}]
  %s2 = inlined_call_operand.vmem [shape: f32[8,1,64], index: 2, kind: input, shape index: {}]
  %s3 = inlined_call_operand.vmem [shape: bf16[1,8,32], index: 3, kind: input, shape index: {}]
  %s4 = inlined_call_operand.vmem [shape: bf16[1,64,128], index: 4, kind: input, shape index: {}]
  %s5 = inlined_call_operand.vmem [shape: f32[1,128], index: 5, kind: input, shape index: {}]
  %s6 = inlined_call_operand.vmem [shape: f32[8,128], index: 6, kind: output, shape index: {}]
  %s7 = sld [smem:[#allocation0]]
  $region38: #{forward.1} parent=0
    _
  %s9 = ssub.s32 1, %s7
  %s10 = scalar_select 0, %s9, %s7
  $region1: #{forward.1} parent=0
    #allocation3 [shape = 'u8[393216]{0}', space=vmem, size = 0x60000, scoped, tag = 'input window, operand 1, single buffered']
    #allocation4 [shape = 's32[1]{0}', space=sflag, size = 0x4, scoped, tag = 'scoped memory for forward.1']
    %11 = vsyncpa [#allocation4], 0
    // Predicated region
    $region2: #{forward.1} parent=1 // pred_check
      _
    $region3: #{forward.1} parent=1 // pred_check_branch
      %13 = sbr.rel (0) target = $region5
    $region4: #{forward.1} parent=1 // pred_region
      _
    $region5: #{forward.1} parent=1 // pred_fallthru
      _
    // Predicated region
    $region6: #{forward.1} parent=1 // pred_check
      _
    $region7: #{forward.1} parent=1 // pred_check_branch
      %15 = sbr.rel (0) target = $region9
    $region8: #{forward.1} parent=1 // pred_region
      %s17 = ssub.s32 12288, 12288
      %18 = vsyncadd [#allocation4], %s17
      %s19 = sshll.u32 [#allocation3], 4
      %s20 = int_to_ptr.vmem [resolvable:$true] %s19
      %25 = dma.hbm_to_vmem [thread:$0]  %s1, 12288, %s20, [#allocation4], 64, 64, 4
    $region9: #{forward.1} parent=1 // pred_fallthru
      _
    // Predicated region
    $region10: #{forward.1} parent=1 // pred_check
      _
    $region11: #{forward.1} parent=1 // pred_check_branch
      %27 = sbr.rel (0) target = $region13
    $region12: #{forward.1} parent=1 // pred_region
      _
    $region13: #{forward.1} parent=1 // pred_fallthru
      _
    // Predicated region
    $region14: #{forward.1} parent=1 // pred_check
      _
    $region15: #{forward.1} parent=1 // pred_check_branch
      %29 = sbr.rel (0) target = $region17
    $region16: #{forward.1} parent=1 // pred_region
      _
    $region17: #{forward.1} parent=1 // pred_fallthru
      _
    // Predicated region
    $region18: #{forward.1} parent=1 // pred_check
      _
    $region19: #{forward.1} parent=1 // pred_check_branch
      %31 = sbr.rel (0) target = $region21
    $region20: #{forward.1} parent=1 // pred_region
      _
    $region21: #{forward.1} parent=1 // pred_fallthru
      _
    // Predicated region
    $region22: #{forward.1} parent=1 // pred_check
      _
    $region23: #{forward.1} parent=1 // pred_check_branch
      %33 = sbr.rel (0) target = $region25
    $region24: #{forward.1} parent=1 // pred_region
      _
    $region25: #{forward.1} parent=1 // pred_fallthru
      _
    // Predicated region
    $region26: #{forward.1} parent=1 // pred_check
      _
    $region27: #{forward.1} parent=1 // pred_check_branch
      %35 = sbr.rel (0) target = $region29
    $region28: #{forward.1} parent=1 // pred_region
      %36 = dma.done [#allocation4], 12288
    $region29: #{forward.1} parent=1 // pred_fallthru
      _
    %vm38 = vcmask 523264
    %39 = vst.msk [vmem:[#allocation2] sm:$0xff] %vm38, 0.0
    %40 = vst.msk [vmem:[#allocation2 + $0x8] sm:$0xff] %vm38, 0.0
    %41 = vst.msk [vmem:[#allocation2 + $0x10] sm:$0xff] %vm38, 0.0
    %42 = vst.msk [vmem:[#allocation2 + $0x18] sm:$0xff] %vm38, 0.0
    %43 = vst.msk [vmem:[#allocation2 + $0x20] sm:$0xff] %vm38, 0.0
    %44 = vst.msk [vmem:[#allocation2 + $0x28] sm:$0xff] %vm38, 0.0
    %v45 = vlaneseq
    %v46 = vshrl.u32 %v45, 7
    %v47 = vadd.s32 %v46, 8
    %v48 = vadd.s32 %v46, 16
    %v49 = vadd.s32 %v46, 24
    %v50 = vand.u32 %v46, 15
    %v51 = vand.u32 %v47, 15
    %v52 = vand.u32 %v48, 15
    %v53 = vand.u32 %v49, 15
    %v54 = vld [vmem:[%s0] sm:$0xff]
    %v55 = vld [vmem:[%s0 + $0x8] sm:$0xff]
    %v56 = vld [vmem:[%s0 + $0x10] sm:$0xff]
    %v57 = vld [vmem:[%s0 + $0x18] sm:$0xff]
    %58 = vst.msk [vmem:[#allocation2 + $0x8] sm:$0xff] %vm38, %v54
    %59 = vst.msk [vmem:[#allocation2 + $0x10] sm:$0xff] %vm38, %v55
    %60 = vst.msk [vmem:[#allocation2 + $0x18] sm:$0xff] %vm38, %v56
    %61 = vst.msk [vmem:[#allocation2 + $0x20] sm:$0xff] %vm38, %v57
    %v62 = vld [vmem:[#allocation2 + $0x7] sm:$0xff]
    %v63 = vld [vmem:[#allocation2 + $0xf] sm:$0xff]
    %v64 = vld [vmem:[#allocation2 + $0x17] sm:$0xff]
    %v65 = vld [vmem:[#allocation2 + $0x1f] sm:$0xff]
    %v66 = vld [vmem:[#allocation2 + $0x9] sm:$0xff]
    %v67 = vld [vmem:[#allocation2 + $0x11] sm:$0xff]
    %v68 = vld [vmem:[#allocation2 + $0x19] sm:$0xff]
    %v69 = vld [vmem:[#allocation2 + $0x21] sm:$0xff]
    %vm70 = vcmp.ge.s32.totalorder %v50, 1
    %vm71 = vcmp.ge.s32.totalorder %v51, 1
    %vm72 = vcmp.ge.s32.totalorder %v52, 1
    %vm73 = vcmp.ge.s32.totalorder %v53, 1
    %v74 = vsel %vm70, %v62, 0.0
    %v75 = vsel %vm71, %v63, 0.0
    %v76 = vsel %vm72, %v64, 0.0
    %v77 = vsel %vm73, %v65, 0.0
    %vm78 = vcmp.lt.s32.totalorder %v50, 15
    %vm79 = vcmp.lt.s32.totalorder %v51, 15
    %vm80 = vcmp.lt.s32.totalorder %v52, 15
    %vm81 = vcmp.lt.s32.totalorder %v53, 15
    %v82 = vsel %vm78, %v66, 0.0
    %v83 = vsel %vm79, %v67, 0.0
    %v84 = vsel %vm80, %v68, 0.0
    %v85 = vsel %vm81, %v69, 0.0
    %90 = vrot.lane.b32.xlu0 %v54, 64
    %v91 = vpop.permute.xlu0 %90
    %92 = vrot.lane.b32.xlu0 %v55, 64
    %v93 = vpop.permute.xlu0 %92
    %94 = vrot.lane.b32.xlu0 %v56, 64
    %v95 = vpop.permute.xlu0 %94
    %96 = vrot.lane.b32.xlu0 %v57, 64
    %v97 = vpop.permute.xlu0 %96
    %v102 = vsel %vm38, %v74, %v91
    %v103 = vsel %vm38, %v75, %v93
    %v104 = vsel %vm38, %v76, %v95
    %v105 = vsel %vm38, %v77, %v97
    %v106 = vpack.c.bf16 %v103, %v102
    %v107 = vpack.c.bf16 %v83, %v82
    %v108 = vpack.c.bf16 %v105, %v104
    %v109 = vpack.c.bf16 %v85, %v84
    %v110 = vld [vmem:[#allocation3] sm:$0xf]
    %v111 = vld [vmem:[#allocation3 + $0x4] sm:$0xf]
    %v112 = vld [vmem:[#allocation3 + $0x8] sm:$0xf]
    %v113 = vld [vmem:[#allocation3 + $0xc] sm:$0xf]
    %v114 = vld [vmem:[#allocation3 + $0x10] sm:$0xf]
    %v115 = vld [vmem:[#allocation3 + $0x14] sm:$0xf]
    %v116 = vld [vmem:[#allocation3 + $0x18] sm:$0xf]
    %v117 = vld [vmem:[#allocation3 + $0x1c] sm:$0xf]
    %v118 = vld [vmem:[#allocation3 + $0x20] sm:$0xf]
    %v119 = vld [vmem:[#allocation3 + $0x24] sm:$0xf]
    %v120 = vld [vmem:[#allocation3 + $0x28] sm:$0xf]
    %v121 = vld [vmem:[#allocation3 + $0x2c] sm:$0xf]
    %v122 = vld [vmem:[#allocation3 + $0x30] sm:$0xf]
    %v123 = vld [vmem:[#allocation3 + $0x34] sm:$0xf]
    %v124 = vld [vmem:[#allocation3 + $0x38] sm:$0xf]
    %v125 = vld [vmem:[#allocation3 + $0x3c] sm:$0xf]
    %v126 = vld [vmem:[#allocation3 + $0x40] sm:$0xf]
    %v127 = vld [vmem:[#allocation3 + $0x44] sm:$0xf]
    %v128 = vld [vmem:[#allocation3 + $0x48] sm:$0xf]
    %v129 = vld [vmem:[#allocation3 + $0x4c] sm:$0xf]
    %v130 = vld [vmem:[#allocation3 + $0x50] sm:$0xf]
    %v131 = vld [vmem:[#allocation3 + $0x54] sm:$0xf]
    %v132 = vld [vmem:[#allocation3 + $0x58] sm:$0xf]
    %v133 = vld [vmem:[#allocation3 + $0x5c] sm:$0xf]
    %v134 = vld [vmem:[%s2] sm:$0x1]
    %v136 = vlaneseq
    %v137 = vshrl.u32 %v136, 7
    %v138 = vsub.s32 0, %v137
    %v139 = vrot.slane %v134, %v138
    %v165 = vunpack.c.l.b16 %v110
    %v166 = vunpack.c.l.b16 %v111
    %v167 = vunpack.c.l.b16 %v112
    %v168 = vunpack.c.l.b16 %v113
    %v169 = vunpack.c.l.b16 %v114
    %v170 = vunpack.c.l.b16 %v115
    %v171 = vunpack.c.l.b16 %v116
    %v172 = vunpack.c.l.b16 %v117
    %v173 = vunpack.c.l.b16 %v118
    %v174 = vunpack.c.l.b16 %v119
    %v175 = vunpack.c.l.b16 %v120
    %v176 = vunpack.c.l.b16 %v121
    %v177 = vunpack.c.l.b16 %v122
    %v178 = vunpack.c.l.b16 %v123
    %v179 = vunpack.c.l.b16 %v124
    %v180 = vunpack.c.l.b16 %v125
    %v181 = vunpack.c.l.b16 %v126
    %v182 = vunpack.c.l.b16 %v127
    %v183 = vunpack.c.l.b16 %v128
    %v184 = vunpack.c.l.b16 %v129
    %v185 = vunpack.c.l.b16 %v130
    %v186 = vunpack.c.l.b16 %v131
    %v187 = vunpack.c.l.b16 %v132
    %v188 = vunpack.c.l.b16 %v133
    %v189 = vpack.c.b16 %v166, %v165
    %v190 = vpack.c.b16 %v168, %v167
    %v191 = vpack.c.b16 %v170, %v169
    %v192 = vpack.c.b16 %v172, %v171
    %v193 = vpack.c.b16 %v174, %v173
    %v194 = vpack.c.b16 %v176, %v175
    %v195 = vpack.c.b16 %v178, %v177
    %v196 = vpack.c.b16 %v180, %v179
    %v197 = vpack.c.b16 %v182, %v181
    %v198 = vpack.c.b16 %v184, %v183
    %v199 = vpack.c.b16 %v186, %v185
    %v200 = vpack.c.b16 %v188, %v187
    %v214 = vsel %vm38, %v107, 0
    %v217 = vsel %vm38, %v109, 0
    %219 = vmatprep.subr.bf16.mxu0 0
    %220 = vmatpush1.bf16.msra.mxu0 %v189
    %221 = vmatprep.subr.bf16.mxu0 0
    %222 = vmatpush1.bf16.msra.mxu0 %v190
    %223 = vmatprep.subr.bf16.mxu0 0
    %224 = vmatpush1.bf16.msra.mxu0 %v191
    %225 = vmatprep.subr.bf16.mxu0 0
    %226 = vmatpush1.bf16.msra.mxu0 %v192
    %227 = vmatprep.subr.bf16.mxu0 0
    %228 = vmatpush1.bf16.msra.mxu0 %v193
    %229 = vmatprep.subr.bf16.mxu0 0
    %230 = vmatpush1.bf16.msra.mxu0 %v194
    %231 = vmatprep.subr.bf16.mxu0 0
    %232 = vmatpush1.bf16.msra.mxu0 %v195
    %233 = vmatprep.subr.bf16.mxu0 0
    %234 = vmatpush1.bf16.msra.mxu0 %v196
    %235 = vmatprep.subr.bf16.mxu0 0
    %236 = vmatpush1.bf16.msra.mxu0 %v197
    %237 = vmatprep.subr.bf16.mxu0 0
    %238 = vmatpush1.bf16.msra.mxu0 %v198
    %239 = vmatprep.subr.bf16.mxu0 0
    %240 = vmatpush1.bf16.msra.mxu0 %v199
    %241 = vmatprep.subr.bf16.mxu0 0
    %242 = vmatpush1.bf16.msra.mxu0 %v200
    %243 = vmatprep.subr.bf16.mxu0 0
    %244 = vmatpush1.bf16.msra.mxu0 0
    %245 = vmatprep.subr.bf16.mxu0 0
    %246 = vmatpush1.bf16.msra.mxu0 0
    %247 = vmatprep.subr.bf16.mxu0 0
    %248 = vmatpush1.bf16.msra.mxu0 0
    %249 = vmatprep.subr.bf16.mxu0 0
    %250 = vmatpush1.bf16.msra.mxu0 0
    %251 = vmatprep.mubr.bf16.mxu0 %v214
    %252 = vmatmul.mubr.bf16.gmra.mrb[0].mxu0 %v106
    %v253 = vpop.f32.mrb[0].mxu0
    %v254 = vadd.f32 %v139, %v253
    %v255 = vpop.f32.mrb[0].mxu0
    %v256 = vpop.f32.mrb[0].mxu0
    %v257 = vadd.f32 %v139, %v256
    %v258 = vpop.f32.mrb[0].mxu0
    %259 = vmatprep.mubr.bf16.mxu0 %v217
    %260 = vmatmul.mubr.bf16.gmra.mrb[0].mxu0 %v108
    %v261 = vpop.f32.mrb[0].mxu0
    %v262 = vadd.f32 %v139, %v261
    %v263 = vpop.f32.mrb[0].mxu0
    %v264 = vpop.f32.mrb[0].mxu0
    %v265 = vadd.f32 %v139, %v264
    %v266 = vpop.f32.mrb[0].mxu0
    %267 = vdwg.mxu0
    %vm268 = vcmp.ge.f32.partialorder %v254, 0.0
    %vm269 = vcmp.ge.f32.partialorder %v257, 0.0
    %vm270 = vcmp.ge.f32.partialorder %v262, 0.0
    %vm271 = vcmp.ge.f32.partialorder %v265, 0.0
    %v272 = vmul.f32 %v254, 0.01
    %v273 = vmul.f32 %v257, 0.01
    %v274 = vmul.f32 %v262, 0.01
    %v275 = vmul.f32 %v265, 0.01
    %v276 = vsel %vm268, %v254, %v272
    %v277 = vsel %vm269, %v257, %v273
    %v278 = vsel %vm270, %v262, %v274
    %v279 = vsel %vm271, %v265, %v275
    %280 = vst.msk [vmem:[#allocation2 + $0x8] sm:$0xff] %vm38, %v276
    %281 = vst.msk [vmem:[#allocation2 + $0x10] sm:$0xff] %vm38, %v277
    %282 = vst.msk [vmem:[#allocation2 + $0x18] sm:$0xff] %vm38, %v278
    %283 = vst.msk [vmem:[#allocation2 + $0x20] sm:$0xff] %vm38, %v279
    %v284 = vld [vmem:[#allocation2 + $0x7] sm:$0xff]
    %v285 = vld [vmem:[#allocation2 + $0xf] sm:$0xff]
    %v286 = vld [vmem:[#allocation2 + $0x17] sm:$0xff]
    %v287 = vld [vmem:[#allocation2 + $0x1f] sm:$0xff]
    %v288 = vld [vmem:[#allocation2 + $0x9] sm:$0xff]
    %v289 = vld [vmem:[#allocation2 + $0x11] sm:$0xff]
    %v290 = vld [vmem:[#allocation2 + $0x19] sm:$0xff]
    %v291 = vld [vmem:[#allocation2 + $0x21] sm:$0xff]
    %v292 = vsel %vm70, %v284, 0.0
    %v293 = vsel %vm71, %v285, 0.0
    %v294 = vsel %vm72, %v286, 0.0
    %v295 = vsel %vm73, %v287, 0.0
    %v296 = vsel %vm78, %v288, 0.0
    %v297 = vsel %vm79, %v289, 0.0
    %v298 = vsel %vm80, %v290, 0.0
    %v299 = vsel %vm81, %v291, 0.0
    %304 = vrot.lane.b32.xlu0 %v276, 64
    %v305 = vpop.permute.xlu0 %304
    %306 = vrot.lane.b32.xlu0 %v277, 64
    %v307 = vpop.permute.xlu0 %306
    %308 = vrot.lane.b32.xlu0 %v278, 64
    %v309 = vpop.permute.xlu0 %308
    %310 = vrot.lane.b32.xlu0 %v279, 64
    %v311 = vpop.permute.xlu0 %310
    %v316 = vsel %vm38, %v292, %v305
    %v317 = vsel %vm38, %v293, %v307
    %v318 = vsel %vm38, %v294, %v309
    %v319 = vsel %vm38, %v295, %v311
    %v320 = vpack.c.bf16 %v317, %v316
    %v321 = vpack.c.bf16 %v297, %v296
    %v322 = vpack.c.bf16 %v319, %v318
    %v323 = vpack.c.bf16 %v299, %v298
    %s324 = scalar_lea.vmem [#allocation3], 96
    %v325 = vld [vmem:[%s324] sm:$0xf]
    %v326 = vld [vmem:[%s324 + $0x4] sm:$0xf]
    %v327 = vld [vmem:[%s324 + $0x8] sm:$0xf]
    %v328 = vld [vmem:[%s324 + $0xc] sm:$0xf]
    %v329 = vld [vmem:[%s324 + $0x10] sm:$0xf]
    %v330 = vld [vmem:[%s324 + $0x14] sm:$0xf]
    %v331 = vld [vmem:[%s324 + $0x18] sm:$0xf]
    %v332 = vld [vmem:[%s324 + $0x1c] sm:$0xf]
    %v333 = vld [vmem:[%s324 + $0x20] sm:$0xf]
    %v334 = vld [vmem:[%s324 + $0x24] sm:$0xf]
    %v335 = vld [vmem:[%s324 + $0x28] sm:$0xf]
    %v336 = vld [vmem:[%s324 + $0x2c] sm:$0xf]
    %v337 = vld [vmem:[%s324 + $0x30] sm:$0xf]
    %v338 = vld [vmem:[%s324 + $0x34] sm:$0xf]
    %v339 = vld [vmem:[%s324 + $0x38] sm:$0xf]
    %v340 = vld [vmem:[%s324 + $0x3c] sm:$0xf]
    %v341 = vld [vmem:[%s324 + $0x40] sm:$0xf]
    %v342 = vld [vmem:[%s324 + $0x44] sm:$0xf]
    %v343 = vld [vmem:[%s324 + $0x48] sm:$0xf]
    %v344 = vld [vmem:[%s324 + $0x4c] sm:$0xf]
    %v345 = vld [vmem:[%s324 + $0x50] sm:$0xf]
    %v346 = vld [vmem:[%s324 + $0x54] sm:$0xf]
    %v347 = vld [vmem:[%s324 + $0x58] sm:$0xf]
    %v348 = vld [vmem:[%s324 + $0x5c] sm:$0xf]
    %s349 = scalar_lea.vmem %s2, 1
    %v350 = vld [vmem:[%s349] sm:$0x1]
    %v352 = vlaneseq
    %v353 = vshrl.u32 %v352, 7
    %v354 = vsub.s32 0, %v353
    %v355 = vrot.slane %v350, %v354
    %v381 = vunpack.c.l.b16 %v325
    %v382 = vunpack.c.l.b16 %v326
    %v383 = vunpack.c.l.b16 %v327
    %v384 = vunpack.c.l.b16 %v328
    %v385 = vunpack.c.l.b16 %v329
    %v386 = vunpack.c.l.b16 %v330
    %v387 = vunpack.c.l.b16 %v331
    %v388 = vunpack.c.l.b16 %v332
    %v389 = vunpack.c.l.b16 %v333
    %v390 = vunpack.c.l.b16 %v334
    %v391 = vunpack.c.l.b16 %v335
    %v392 = vunpack.c.l.b16 %v336
    %v393 = vunpack.c.l.b16 %v337
    %v394 = vunpack.c.l.b16 %v338
    %v395 = vunpack.c.l.b16 %v339
    %v396 = vunpack.c.l.b16 %v340
    %v397 = vunpack.c.l.b16 %v341
    %v398 = vunpack.c.l.b16 %v342
    %v399 = vunpack.c.l.b16 %v343
    %v400 = vunpack.c.l.b16 %v344
    %v401 = vunpack.c.l.b16 %v345
    %v402 = vunpack.c.l.b16 %v346
    %v403 = vunpack.c.l.b16 %v347
    %v404 = vunpack.c.l.b16 %v348
    %v405 = vpack.c.b16 %v382, %v381
    %v406 = vpack.c.b16 %v384, %v383
    %v407 = vpack.c.b16 %v386, %v385
    %v408 = vpack.c.b16 %v388, %v387
    %v409 = vpack.c.b16 %v390, %v389
    %v410 = vpack.c.b16 %v392, %v391
    %v411 = vpack.c.b16 %v394, %v393
    %v412 = vpack.c.b16 %v396, %v395
    %v413 = vpack.c.b16 %v398, %v397
    %v414 = vpack.c.b16 %v400, %v399
    %v415 = vpack.c.b16 %v402, %v401
    %v416 = vpack.c.b16 %v404, %v403
    %v430 = vsel %vm38, %v321, 0
    %v433 = vsel %vm38, %v323, 0
    %435 = vmatprep.subr.bf16.mxu0 0
    %436 = vmatpush1.bf16.msra.mxu0 %v405
    %437 = vmatprep.subr.bf16.mxu0 0
    %438 = vmatpush1.bf16.msra.mxu0 %v406
    %439 = vmatprep.subr.bf16.mxu0 0
    %440 = vmatpush1.bf16.msra.mxu0 %v407
    %441 = vmatprep.subr.bf16.mxu0 0
    %442 = vmatpush1.bf16.msra.mxu0 %v408
    %443 = vmatprep.subr.bf16.mxu0 0
    %444 = vmatpush1.bf16.msra.mxu0 %v409
    %445 = vmatprep.subr.bf16.mxu0 0
    %446 = vmatpush1.bf16.msra.mxu0 %v410
    %447 = vmatprep.subr.bf16.mxu0 0
    %448 = vmatpush1.bf16.msra.mxu0 %v411
    %449 = vmatprep.subr.bf16.mxu0 0
    %450 = vmatpush1.bf16.msra.mxu0 %v412
    %451 = vmatprep.subr.bf16.mxu0 0
    %452 = vmatpush1.bf16.msra.mxu0 %v413
    %453 = vmatprep.subr.bf16.mxu0 0
    %454 = vmatpush1.bf16.msra.mxu0 %v414
    %455 = vmatprep.subr.bf16.mxu0 0
    %456 = vmatpush1.bf16.msra.mxu0 %v415
    %457 = vmatprep.subr.bf16.mxu0 0
    %458 = vmatpush1.bf16.msra.mxu0 %v416
    %459 = vmatprep.subr.bf16.mxu0 0
    %460 = vmatpush1.bf16.msra.mxu0 0
    %461 = vmatprep.subr.bf16.mxu0 0
    %462 = vmatpush1.bf16.msra.mxu0 0
    %463 = vmatprep.subr.bf16.mxu0 0
    %464 = vmatpush1.bf16.msra.mxu0 0
    %465 = vmatprep.subr.bf16.mxu0 0
    %466 = vmatpush1.bf16.msra.mxu0 0
    %467 = vmatprep.mubr.bf16.mxu0 %v430
    %468 = vmatmul.mubr.bf16.gmra.mrb[0].mxu0 %v320
    %v469 = vpop.f32.mrb[0].mxu0
    %v470 = vadd.f32 %v355, %v469
    %v471 = vpop.f32.mrb[0].mxu0
    %v472 = vpop.f32.mrb[0].mxu0
    %v473 = vadd.f32 %v355, %v472
    %v474 = vpop.f32.mrb[0].mxu0
    %475 = vmatprep.mubr.bf16.mxu0 %v433
    %476 = vmatmul.mubr.bf16.gmra.mrb[0].mxu0 %v322
    %v477 = vpop.f32.mrb[0].mxu0
    %v478 = vadd.f32 %v355, %v477
    %v479 = vpop.f32.mrb[0].mxu0
    %v480 = vpop.f32.mrb[0].mxu0
    %v481 = vadd.f32 %v355, %v480
    %v482 = vpop.f32.mrb[0].mxu0
    %483 = vdwg.mxu0
    %vm484 = vcmp.ge.f32.partialorder %v470, 0.0
    %vm485 = vcmp.ge.f32.partialorder %v473, 0.0
    %vm486 = vcmp.ge.f32.partialorder %v478, 0.0
    %vm487 = vcmp.ge.f32.partialorder %v481, 0.0
    %v488 = vmul.f32 %v470, 0.01
    %v489 = vmul.f32 %v473, 0.01
    %v490 = vmul.f32 %v478, 0.01
    %v491 = vmul.f32 %v481, 0.01
    %v492 = vsel %vm484, %v470, %v488
    %v493 = vsel %vm485, %v473, %v489
    %v494 = vsel %vm486, %v478, %v490
    %v495 = vsel %vm487, %v481, %v491
    %496 = vst.msk [vmem:[#allocation2 + $0x8] sm:$0xff] %vm38, %v492
    %497 = vst.msk [vmem:[#allocation2 + $0x10] sm:$0xff] %vm38, %v493
    %498 = vst.msk [vmem:[#allocation2 + $0x18] sm:$0xff] %vm38, %v494
    %499 = vst.msk [vmem:[#allocation2 + $0x20] sm:$0xff] %vm38, %v495
    %v500 = vld [vmem:[#allocation2 + $0x6] sm:$0xff]
    %v501 = vld [vmem:[#allocation2 + $0xe] sm:$0xff]
    %v502 = vld [vmem:[#allocation2 + $0x16] sm:$0xff]
    %v503 = vld [vmem:[#allocation2 + $0x1e] sm:$0xff]
    %v504 = vld [vmem:[#allocation2 + $0xa] sm:$0xff]
    %v505 = vld [vmem:[#allocation2 + $0x12] sm:$0xff]
    %v506 = vld [vmem:[#allocation2 + $0x1a] sm:$0xff]
    %v507 = vld [vmem:[#allocation2 + $0x22] sm:$0xff]
    %vm508 = vcmp.ge.s32.totalorder %v50, 2
    %vm509 = vcmp.ge.s32.totalorder %v51, 2
    %vm510 = vcmp.ge.s32.totalorder %v52, 2
    %vm511 = vcmp.ge.s32.totalorder %v53, 2
    %v512 = vsel %vm508, %v500, 0.0
    %v513 = vsel %vm509, %v501, 0.0
    %v514 = vsel %vm510, %v502, 0.0
    %v515 = vsel %vm511, %v503, 0.0
    %vm516 = vcmp.lt.s32.totalorder %v50, 14
    %vm517 = vcmp.lt.s32.totalorder %v51, 14
    %vm518 = vcmp.lt.s32.totalorder %v52, 14
    %vm519 = vcmp.lt.s32.totalorder %v53, 14
    %v520 = vsel %vm516, %v504, 0.0
    %v521 = vsel %vm517, %v505, 0.0
    %v522 = vsel %vm518, %v506, 0.0
    %v523 = vsel %vm519, %v507, 0.0
    %528 = vrot.lane.b32.xlu0 %v492, 64
    %v529 = vpop.permute.xlu0 %528
    %530 = vrot.lane.b32.xlu0 %v493, 64
    %v531 = vpop.permute.xlu0 %530
    %532 = vrot.lane.b32.xlu0 %v494, 64
    %v533 = vpop.permute.xlu0 %532
    %534 = vrot.lane.b32.xlu0 %v495, 64
    %v535 = vpop.permute.xlu0 %534
    %v540 = vsel %vm38, %v512, %v529
    %v541 = vsel %vm38, %v513, %v531
    %v542 = vsel %vm38, %v514, %v533
    %v543 = vsel %vm38, %v515, %v535
    %v544 = vpack.c.bf16 %v541, %v540
    %v545 = vpack.c.bf16 %v521, %v520
    %v546 = vpack.c.bf16 %v543, %v542
    %v547 = vpack.c.bf16 %v523, %v522
    %s548 = scalar_lea.vmem [#allocation3], 192
    %v549 = vld [vmem:[%s548] sm:$0xf]
    %v550 = vld [vmem:[%s548 + $0x4] sm:$0xf]
    %v551 = vld [vmem:[%s548 + $0x8] sm:$0xf]
    %v552 = vld [vmem:[%s548 + $0xc] sm:$0xf]
    %v553 = vld [vmem:[%s548 + $0x10] sm:$0xf]
    %v554 = vld [vmem:[%s548 + $0x14] sm:$0xf]
    %v555 = vld [vmem:[%s548 + $0x18] sm:$0xf]
    %v556 = vld [vmem:[%s548 + $0x1c] sm:$0xf]
    %v557 = vld [vmem:[%s548 + $0x20] sm:$0xf]
    %v558 = vld [vmem:[%s548 + $0x24] sm:$0xf]
    %v559 = vld [vmem:[%s548 + $0x28] sm:$0xf]
    %v560 = vld [vmem:[%s548 + $0x2c] sm:$0xf]
    %v561 = vld [vmem:[%s548 + $0x30] sm:$0xf]
    %v562 = vld [vmem:[%s548 + $0x34] sm:$0xf]
    %v563 = vld [vmem:[%s548 + $0x38] sm:$0xf]
    %v564 = vld [vmem:[%s548 + $0x3c] sm:$0xf]
    %v565 = vld [vmem:[%s548 + $0x40] sm:$0xf]
    %v566 = vld [vmem:[%s548 + $0x44] sm:$0xf]
    %v567 = vld [vmem:[%s548 + $0x48] sm:$0xf]
    %v568 = vld [vmem:[%s548 + $0x4c] sm:$0xf]
    %v569 = vld [vmem:[%s548 + $0x50] sm:$0xf]
    %v570 = vld [vmem:[%s548 + $0x54] sm:$0xf]
    %v571 = vld [vmem:[%s548 + $0x58] sm:$0xf]
    %v572 = vld [vmem:[%s548 + $0x5c] sm:$0xf]
    %s573 = scalar_lea.vmem %s2, 2
    %v574 = vld [vmem:[%s573] sm:$0x1]
    %v576 = vlaneseq
    %v577 = vshrl.u32 %v576, 7
    %v578 = vsub.s32 0, %v577
    %v579 = vrot.slane %v574, %v578
    %v605 = vunpack.c.l.b16 %v549
    %v606 = vunpack.c.l.b16 %v550
    %v607 = vunpack.c.l.b16 %v551
    %v608 = vunpack.c.l.b16 %v552
    %v609 = vunpack.c.l.b16 %v553
    %v610 = vunpack.c.l.b16 %v554
    %v611 = vunpack.c.l.b16 %v555
    %v612 = vunpack.c.l.b16 %v556
    %v613 = vunpack.c.l.b16 %v557
    %v614 = vunpack.c.l.b16 %v558
    %v615 = vunpack.c.l.b16 %v559
    %v616 = vunpack.c.l.b16 %v560
    %v617 = vunpack.c.l.b16 %v561
    %v618 = vunpack.c.l.b16 %v562
    %v619 = vunpack.c.l.b16 %v563
    %v620 = vunpack.c.l.b16 %v564
    %v621 = vunpack.c.l.b16 %v565
    %v622 = vunpack.c.l.b16 %v566
    %v623 = vunpack.c.l.b16 %v567
    %v624 = vunpack.c.l.b16 %v568
    %v625 = vunpack.c.l.b16 %v569
    %v626 = vunpack.c.l.b16 %v570
    %v627 = vunpack.c.l.b16 %v571
    %v628 = vunpack.c.l.b16 %v572
    %v629 = vpack.c.b16 %v606, %v605
    %v630 = vpack.c.b16 %v608, %v607
    %v631 = vpack.c.b16 %v610, %v609
    %v632 = vpack.c.b16 %v612, %v611
    %v633 = vpack.c.b16 %v614, %v613
    %v634 = vpack.c.b16 %v616, %v615
    %v635 = vpack.c.b16 %v618, %v617
    %v636 = vpack.c.b16 %v620, %v619
    %v637 = vpack.c.b16 %v622, %v621
    %v638 = vpack.c.b16 %v624, %v623
    %v639 = vpack.c.b16 %v626, %v625
    %v640 = vpack.c.b16 %v628, %v627
    %v654 = vsel %vm38, %v545, 0
    %v657 = vsel %vm38, %v547, 0
    %659 = vmatprep.subr.bf16.mxu0 0
    %660 = vmatpush1.bf16.msra.mxu0 %v629
    %661 = vmatprep.subr.bf16.mxu0 0
    %662 = vmatpush1.bf16.msra.mxu0 %v630
    %663 = vmatprep.subr.bf16.mxu0 0
    %664 = vmatpush1.bf16.msra.mxu0 %v631
    %665 = vmatprep.subr.bf16.mxu0 0
    %666 = vmatpush1.bf16.msra.mxu0 %v632
    %667 = vmatprep.subr.bf16.mxu0 0
    %668 = vmatpush1.bf16.msra.mxu0 %v633
    %669 = vmatprep.subr.bf16.mxu0 0
    %670 = vmatpush1.bf16.msra.mxu0 %v634
    %671 = vmatprep.subr.bf16.mxu0 0
    %672 = vmatpush1.bf16.msra.mxu0 %v635
    %673 = vmatprep.subr.bf16.mxu0 0
    %674 = vmatpush1.bf16.msra.mxu0 %v636
    %675 = vmatprep.subr.bf16.mxu0 0
    %676 = vmatpush1.bf16.msra.mxu0 %v637
    %677 = vmatprep.subr.bf16.mxu0 0
    %678 = vmatpush1.bf16.msra.mxu0 %v638
    %679 = vmatprep.subr.bf16.mxu0 0
    %680 = vmatpush1.bf16.msra.mxu0 %v639
    %681 = vmatprep.subr.bf16.mxu0 0
    %682 = vmatpush1.bf16.msra.mxu0 %v640
    %683 = vmatprep.subr.bf16.mxu0 0
    %684 = vmatpush1.bf16.msra.mxu0 0
    %685 = vmatprep.subr.bf16.mxu0 0
    %686 = vmatpush1.bf16.msra.mxu0 0
    %687 = vmatprep.subr.bf16.mxu0 0
    %688 = vmatpush1.bf16.msra.mxu0 0
    %689 = vmatprep.subr.bf16.mxu0 0
    %690 = vmatpush1.bf16.msra.mxu0 0
    %691 = vmatprep.mubr.bf16.mxu0 %v654
    %692 = vmatmul.mubr.bf16.gmra.mrb[0].mxu0 %v544
    %v693 = vpop.f32.mrb[0].mxu0
    %v694 = vadd.f32 %v579, %v693
    %v695 = vpop.f32.mrb[0].mxu0
    %v696 = vpop.f32.mrb[0].mxu0
    %v697 = vadd.f32 %v579, %v696
    %v698 = vpop.f32.mrb[0].mxu0
    %699 = vmatprep.mubr.bf16.mxu0 %v657
    %700 = vmatmul.mubr.bf16.gmra.mrb[0].mxu0 %v546
    %v701 = vpop.f32.mrb[0].mxu0
    %v702 = vadd.f32 %v579, %v701
    %v703 = vpop.f32.mrb[0].mxu0
    %v704 = vpop.f32.mrb[0].mxu0
    %v705 = vadd.f32 %v579, %v704
    %v706 = vpop.f32.mrb[0].mxu0
    %707 = vdwg.mxu0
    %vm708 = vcmp.ge.f32.partialorder %v694, 0.0
    %vm709 = vcmp.ge.f32.partialorder %v697, 0.0
    %vm710 = vcmp.ge.f32.partialorder %v702, 0.0
    %vm711 = vcmp.ge.f32.partialorder %v705, 0.0
    %v712 = vmul.f32 %v694, 0.01
    %v713 = vmul.f32 %v697, 0.01
    %v714 = vmul.f32 %v702, 0.01
    %v715 = vmul.f32 %v705, 0.01
    %v716 = vsel %vm708, %v694, %v712
    %v717 = vsel %vm709, %v697, %v713
    %v718 = vsel %vm710, %v702, %v714
    %v719 = vsel %vm711, %v705, %v715
    %720 = vst.msk [vmem:[#allocation2 + $0x8] sm:$0xff] %vm38, %v716
    %721 = vst.msk [vmem:[#allocation2 + $0x10] sm:$0xff] %vm38, %v717
    %722 = vst.msk [vmem:[#allocation2 + $0x18] sm:$0xff] %vm38, %v718
    %723 = vst.msk [vmem:[#allocation2 + $0x20] sm:$0xff] %vm38, %v719
    %v724 = vld [vmem:[#allocation2 + $0x6] sm:$0xff]
    %v725 = vld [vmem:[#allocation2 + $0xe] sm:$0xff]
    %v726 = vld [vmem:[#allocation2 + $0x16] sm:$0xff]
    %v727 = vld [vmem:[#allocation2 + $0x1e] sm:$0xff]
    %v728 = vld [vmem:[#allocation2 + $0xa] sm:$0xff]
    %v729 = vld [vmem:[#allocation2 + $0x12] sm:$0xff]
    %v730 = vld [vmem:[#allocation2 + $0x1a] sm:$0xff]
    %v731 = vld [vmem:[#allocation2 + $0x22] sm:$0xff]
    %v732 = vsel %vm508, %v724, 0.0
    %v733 = vsel %vm509, %v725, 0.0
    %v734 = vsel %vm510, %v726, 0.0
    %v735 = vsel %vm511, %v727, 0.0
    %v736 = vsel %vm516, %v728, 0.0
    %v737 = vsel %vm517, %v729, 0.0
    %v738 = vsel %vm518, %v730, 0.0
    %v739 = vsel %vm519, %v731, 0.0
    %744 = vrot.lane.b32.xlu0 %v716, 64
    %v745 = vpop.permute.xlu0 %744
    %746 = vrot.lane.b32.xlu0 %v717, 64
    %v747 = vpop.permute.xlu0 %746
    %748 = vrot.lane.b32.xlu0 %v718, 64
    %v749 = vpop.permute.xlu0 %748
    %750 = vrot.lane.b32.xlu0 %v719, 64
    %v751 = vpop.permute.xlu0 %750
    %v756 = vsel %vm38, %v732, %v745
    %v757 = vsel %vm38, %v733, %v747
    %v758 = vsel %vm38, %v734, %v749
    %v759 = vsel %vm38, %v735, %v751
    %v760 = vpack.c.bf16 %v757, %v756
    %v761 = vpack.c.bf16 %v737, %v736
    %v762 = vpack.c.bf16 %v759, %v758
    %v763 = vpack.c.bf16 %v739, %v738
    %s764 = scalar_lea.vmem [#allocation3], 288
    %v765 = vld [vmem:[%s764] sm:$0xf]
    %v766 = vld [vmem:[%s764 + $0x4] sm:$0xf]
    %v767 = vld [vmem:[%s764 + $0x8] sm:$0xf]
    %v768 = vld [vmem:[%s764 + $0xc] sm:$0xf]
    %v769 = vld [vmem:[%s764 + $0x10] sm:$0xf]
    %v770 = vld [vmem:[%s764 + $0x14] sm:$0xf]
    %v771 = vld [vmem:[%s764 + $0x18] sm:$0xf]
    %v772 = vld [vmem:[%s764 + $0x1c] sm:$0xf]
    %v773 = vld [vmem:[%s764 + $0x20] sm:$0xf]
    %v774 = vld [vmem:[%s764 + $0x24] sm:$0xf]
    %v775 = vld [vmem:[%s764 + $0x28] sm:$0xf]
    %v776 = vld [vmem:[%s764 + $0x2c] sm:$0xf]
    %v777 = vld [vmem:[%s764 + $0x30] sm:$0xf]
    %v778 = vld [vmem:[%s764 + $0x34] sm:$0xf]
    %v779 = vld [vmem:[%s764 + $0x38] sm:$0xf]
    %v780 = vld [vmem:[%s764 + $0x3c] sm:$0xf]
    %v781 = vld [vmem:[%s764 + $0x40] sm:$0xf]
    %v782 = vld [vmem:[%s764 + $0x44] sm:$0xf]
    %v783 = vld [vmem:[%s764 + $0x48] sm:$0xf]
    %v784 = vld [vmem:[%s764 + $0x4c] sm:$0xf]
    %v785 = vld [vmem:[%s764 + $0x50] sm:$0xf]
    %v786 = vld [vmem:[%s764 + $0x54] sm:$0xf]
    %v787 = vld [vmem:[%s764 + $0x58] sm:$0xf]
    %v788 = vld [vmem:[%s764 + $0x5c] sm:$0xf]
    %s789 = scalar_lea.vmem %s2, 3
    %v790 = vld [vmem:[%s789] sm:$0x1]
    %v792 = vlaneseq
    %v793 = vshrl.u32 %v792, 7
    %v794 = vsub.s32 0, %v793
    %v795 = vrot.slane %v790, %v794
    %v821 = vunpack.c.l.b16 %v765
    %v822 = vunpack.c.l.b16 %v766
    %v823 = vunpack.c.l.b16 %v767
    %v824 = vunpack.c.l.b16 %v768
    %v825 = vunpack.c.l.b16 %v769
    %v826 = vunpack.c.l.b16 %v770
    %v827 = vunpack.c.l.b16 %v771
    %v828 = vunpack.c.l.b16 %v772
    %v829 = vunpack.c.l.b16 %v773
    %v830 = vunpack.c.l.b16 %v774
    %v831 = vunpack.c.l.b16 %v775
    %v832 = vunpack.c.l.b16 %v776
    %v833 = vunpack.c.l.b16 %v777
    %v834 = vunpack.c.l.b16 %v778
    %v835 = vunpack.c.l.b16 %v779
    %v836 = vunpack.c.l.b16 %v780
    %v837 = vunpack.c.l.b16 %v781
    %v838 = vunpack.c.l.b16 %v782
    %v839 = vunpack.c.l.b16 %v783
    %v840 = vunpack.c.l.b16 %v784
    %v841 = vunpack.c.l.b16 %v785
    %v842 = vunpack.c.l.b16 %v786
    %v843 = vunpack.c.l.b16 %v787
    %v844 = vunpack.c.l.b16 %v788
    %v845 = vpack.c.b16 %v822, %v821
    %v846 = vpack.c.b16 %v824, %v823
    %v847 = vpack.c.b16 %v826, %v825
    %v848 = vpack.c.b16 %v828, %v827
    %v849 = vpack.c.b16 %v830, %v829
    %v850 = vpack.c.b16 %v832, %v831
    %v851 = vpack.c.b16 %v834, %v833
    %v852 = vpack.c.b16 %v836, %v835
    %v853 = vpack.c.b16 %v838, %v837
    %v854 = vpack.c.b16 %v840, %v839
    %v855 = vpack.c.b16 %v842, %v841
    %v856 = vpack.c.b16 %v844, %v843
    %v870 = vsel %vm38, %v761, 0
    %v873 = vsel %vm38, %v763, 0
    %875 = vmatprep.subr.bf16.mxu0 0
    %876 = vmatpush1.bf16.msra.mxu0 %v845
    %877 = vmatprep.subr.bf16.mxu0 0
    %878 = vmatpush1.bf16.msra.mxu0 %v846
    %879 = vmatprep.subr.bf16.mxu0 0
    %880 = vmatpush1.bf16.msra.mxu0 %v847
    %881 = vmatprep.subr.bf16.mxu0 0
    %882 = vmatpush1.bf16.msra.mxu0 %v848
    %883 = vmatprep.subr.bf16.mxu0 0
    %884 = vmatpush1.bf16.msra.mxu0 %v849
    %885 = vmatprep.subr.bf16.mxu0 0
    %886 = vmatpush1.bf16.msra.mxu0 %v850
    %887 = vmatprep.subr.bf16.mxu0 0
    %888 = vmatpush1.bf16.msra.mxu0 %v851
    %889 = vmatprep.subr.bf16.mxu0 0
    %890 = vmatpush1.bf16.msra.mxu0 %v852
    %891 = vmatprep.subr.bf16.mxu0 0
    %892 = vmatpush1.bf16.msra.mxu0 %v853
    %893 = vmatprep.subr.bf16.mxu0 0
    %894 = vmatpush1.bf16.msra.mxu0 %v854
    %895 = vmatprep.subr.bf16.mxu0 0
    %896 = vmatpush1.bf16.msra.mxu0 %v855
    %897 = vmatprep.subr.bf16.mxu0 0
    %898 = vmatpush1.bf16.msra.mxu0 %v856
    %899 = vmatprep.subr.bf16.mxu0 0
    %900 = vmatpush1.bf16.msra.mxu0 0
    %901 = vmatprep.subr.bf16.mxu0 0
    %902 = vmatpush1.bf16.msra.mxu0 0
    %903 = vmatprep.subr.bf16.mxu0 0
    %904 = vmatpush1.bf16.msra.mxu0 0
    %905 = vmatprep.subr.bf16.mxu0 0
    %906 = vmatpush1.bf16.msra.mxu0 0
    %907 = vmatprep.mubr.bf16.mxu0 %v870
    %908 = vmatmul.mubr.bf16.gmra.mrb[0].mxu0 %v760
    %v909 = vpop.f32.mrb[0].mxu0
    %v910 = vadd.f32 %v795, %v909
    %v911 = vpop.f32.mrb[0].mxu0
    %v912 = vpop.f32.mrb[0].mxu0
    %v913 = vadd.f32 %v795, %v912
    %v914 = vpop.f32.mrb[0].mxu0
    %915 = vmatprep.mubr.bf16.mxu0 %v873
    %916 = vmatmul.mubr.bf16.gmra.mrb[0].mxu0 %v762
    %v917 = vpop.f32.mrb[0].mxu0
    %v918 = vadd.f32 %v795, %v917
    %v919 = vpop.f32.mrb[0].mxu0
    %v920 = vpop.f32.mrb[0].mxu0
    %v921 = vadd.f32 %v795, %v920
    %v922 = vpop.f32.mrb[0].mxu0
    %923 = vdwg.mxu0
    %vm924 = vcmp.ge.f32.partialorder %v910, 0.0
    %vm925 = vcmp.ge.f32.partialorder %v913, 0.0
    %vm926 = vcmp.ge.f32.partialorder %v918, 0.0
    %vm927 = vcmp.ge.f32.partialorder %v921, 0.0
    %v928 = vmul.f32 %v910, 0.01
    %v929 = vmul.f32 %v913, 0.01
    %v930 = vmul.f32 %v918, 0.01
    %v931 = vmul.f32 %v921, 0.01
    %v932 = vsel %vm924, %v910, %v928
    %v933 = vsel %vm925, %v913, %v929
    %v934 = vsel %vm926, %v918, %v930
    %v935 = vsel %vm927, %v921, %v931
    %936 = vst.msk [vmem:[#allocation2 + $0x8] sm:$0xff] %vm38, %v932
    %937 = vst.msk [vmem:[#allocation2 + $0x10] sm:$0xff] %vm38, %v933
    %938 = vst.msk [vmem:[#allocation2 + $0x18] sm:$0xff] %vm38, %v934
    %939 = vst.msk [vmem:[#allocation2 + $0x20] sm:$0xff] %vm38, %v935
    %v940 = vld [vmem:[#allocation2 + $0x4] sm:$0xff]
    %v941 = vld [vmem:[#allocation2 + $0xc] sm:$0xff]
    %v942 = vld [vmem:[#allocation2 + $0x14] sm:$0xff]
    %v943 = vld [vmem:[#allocation2 + $0x1c] sm:$0xff]
    %v944 = vld [vmem:[#allocation2 + $0x24] sm:$0xff]
    %vm945 = vcmp.ge.s32.totalorder %v50, 4
    %vm946 = vcmp.ge.s32.totalorder %v51, 4
    %vm947 = vcmp.ge.s32.totalorder %v52, 4
    %vm948 = vcmp.ge.s32.totalorder %v53, 4
    %v949 = vsel %vm945, %v940, 0.0
    %v950 = vsel %vm946, %v941, 0.0
    %v951 = vsel %vm947, %v942, 0.0
    %v952 = vsel %vm948, %v943, 0.0
    %vm953 = vcmp.lt.s32.totalorder %v50, 12
    %vm954 = vcmp.lt.s32.totalorder %v51, 12
    %vm955 = vcmp.lt.s32.totalorder %v52, 12
    %vm956 = vcmp.lt.s32.totalorder %v53, 12
    %v957 = vsel %vm953, %v941, 0.0
    %v958 = vsel %vm954, %v942, 0.0
    %v959 = vsel %vm955, %v943, 0.0
    %v960 = vsel %vm956, %v944, 0.0
    %965 = vrot.lane.b32.xlu0 %v932, 64
    %v966 = vpop.permute.xlu0 %965
    %967 = vrot.lane.b32.xlu0 %v933, 64
    %v968 = vpop.permute.xlu0 %967
    %969 = vrot.lane.b32.xlu0 %v934, 64
    %v970 = vpop.permute.xlu0 %969
    %971 = vrot.lane.b32.xlu0 %v935, 64
    %v972 = vpop.permute.xlu0 %971
    %v977 = vsel %vm38, %v949, %v966
    %v978 = vsel %vm38, %v950, %v968
    %v979 = vsel %vm38, %v951, %v970
    %v980 = vsel %vm38, %v952, %v972
    %v981 = vpack.c.bf16 %v978, %v977
    %v982 = vpack.c.bf16 %v958, %v957
    %v983 = vpack.c.bf16 %v980, %v979
    %v984 = vpack.c.bf16 %v960, %v959
    %s985 = scalar_lea.vmem [#allocation3], 384
    %v986 = vld [vmem:[%s985] sm:$0xf]
    %v987 = vld [vmem:[%s985 + $0x4] sm:$0xf]
    %v988 = vld [vmem:[%s985 + $0x8] sm:$0xf]
    %v989 = vld [vmem:[%s985 + $0xc] sm:$0xf]
    %v990 = vld [vmem:[%s985 + $0x10] sm:$0xf]
    %v991 = vld [vmem:[%s985 + $0x14] sm:$0xf]
    %v992 = vld [vmem:[%s985 + $0x18] sm:$0xf]
    %v993 = vld [vmem:[%s985 + $0x1c] sm:$0xf]
    %v994 = vld [vmem:[%s985 + $0x20] sm:$0xf]
    %v995 = vld [vmem:[%s985 + $0x24] sm:$0xf]
    %v996 = vld [vmem:[%s985 + $0x28] sm:$0xf]
    %v997 = vld [vmem:[%s985 + $0x2c] sm:$0xf]
    %v998 = vld [vmem:[%s985 + $0x30] sm:$0xf]
    %v999 = vld [vmem:[%s985 + $0x34] sm:$0xf]
    %v1000 = vld [vmem:[%s985 + $0x38] sm:$0xf]
    %v1001 = vld [vmem:[%s985 + $0x3c] sm:$0xf]
    %v1002 = vld [vmem:[%s985 + $0x40] sm:$0xf]
    %v1003 = vld [vmem:[%s985 + $0x44] sm:$0xf]
    %v1004 = vld [vmem:[%s985 + $0x48] sm:$0xf]
    %v1005 = vld [vmem:[%s985 + $0x4c] sm:$0xf]
    %v1006 = vld [vmem:[%s985 + $0x50] sm:$0xf]
    %v1007 = vld [vmem:[%s985 + $0x54] sm:$0xf]
    %v1008 = vld [vmem:[%s985 + $0x58] sm:$0xf]
    %v1009 = vld [vmem:[%s985 + $0x5c] sm:$0xf]
    %s1010 = scalar_lea.vmem %s2, 4
    %v1011 = vld [vmem:[%s1010] sm:$0x1]
    %v1013 = vlaneseq
    %v1014 = vshrl.u32 %v1013, 7
    %v1015 = vsub.s32 0, %v1014
    %v1016 = vrot.slane %v1011, %v1015
    %v1042 = vunpack.c.l.b16 %v986
    %v1043 = vunpack.c.l.b16 %v987
    %v1044 = vunpack.c.l.b16 %v988
    %v1045 = vunpack.c.l.b16 %v989
    %v1046 = vunpack.c.l.b16 %v990
    %v1047 = vunpack.c.l.b16 %v991
    %v1048 = vunpack.c.l.b16 %v992
    %v1049 = vunpack.c.l.b16 %v993
    %v1050 = vunpack.c.l.b16 %v994
    %v1051 = vunpack.c.l.b16 %v995
    %v1052 = vunpack.c.l.b16 %v996
    %v1053 = vunpack.c.l.b16 %v997
    %v1054 = vunpack.c.l.b16 %v998
    %v1055 = vunpack.c.l.b16 %v999
    %v1056 = vunpack.c.l.b16 %v1000
    %v1057 = vunpack.c.l.b16 %v1001
    %v1058 = vunpack.c.l.b16 %v1002
    %v1059 = vunpack.c.l.b16 %v1003
    %v1060 = vunpack.c.l.b16 %v1004
    %v1061 = vunpack.c.l.b16 %v1005
    %v1062 = vunpack.c.l.b16 %v1006
    %v1063 = vunpack.c.l.b16 %v1007
    %v1064 = vunpack.c.l.b16 %v1008
    %v1065 = vunpack.c.l.b16 %v1009
    %v1066 = vpack.c.b16 %v1043, %v1042
    %v1067 = vpack.c.b16 %v1045, %v1044
    %v1068 = vpack.c.b16 %v1047, %v1046
    %v1069 = vpack.c.b16 %v1049, %v1048
    %v1070 = vpack.c.b16 %v1051, %v1050
    %v1071 = vpack.c.b16 %v1053, %v1052
    %v1072 = vpack.c.b16 %v1055, %v1054
    %v1073 = vpack.c.b16 %v1057, %v1056
    %v1074 = vpack.c.b16 %v1059, %v1058
    %v1075 = vpack.c.b16 %v1061, %v1060
    %v1076 = vpack.c.b16 %v1063, %v1062
    %v1077 = vpack.c.b16 %v1065, %v1064
    %v1091 = vsel %vm38, %v982, 0
    %v1094 = vsel %vm38, %v984, 0
    %1096 = vmatprep.subr.bf16.mxu0 0
    %1097 = vmatpush1.bf16.msra.mxu0 %v1066
    %1098 = vmatprep.subr.bf16.mxu0 0
    %1099 = vmatpush1.bf16.msra.mxu0 %v1067
    %1100 = vmatprep.subr.bf16.mxu0 0
    %1101 = vmatpush1.bf16.msra.mxu0 %v1068
    %1102 = vmatprep.subr.bf16.mxu0 0
    %1103 = vmatpush1.bf16.msra.mxu0 %v1069
    %1104 = vmatprep.subr.bf16.mxu0 0
    %1105 = vmatpush1.bf16.msra.mxu0 %v1070
    %1106 = vmatprep.subr.bf16.mxu0 0
    %1107 = vmatpush1.bf16.msra.mxu0 %v1071
    %1108 = vmatprep.subr.bf16.mxu0 0
    %1109 = vmatpush1.bf16.msra.mxu0 %v1072
    %1110 = vmatprep.subr.bf16.mxu0 0
    %1111 = vmatpush1.bf16.msra.mxu0 %v1073
    %1112 = vmatprep.subr.bf16.mxu0 0
    %1113 = vmatpush1.bf16.msra.mxu0 %v1074
    %1114 = vmatprep.subr.bf16.mxu0 0
    %1115 = vmatpush1.bf16.msra.mxu0 %v1075
    %1116 = vmatprep.subr.bf16.mxu0 0
    %1117 = vmatpush1.bf16.msra.mxu0 %v1076
    %1118 = vmatprep.subr.bf16.mxu0 0
    %1119 = vmatpush1.bf16.msra.mxu0 %v1077
    %1120 = vmatprep.subr.bf16.mxu0 0
    %1121 = vmatpush1.bf16.msra.mxu0 0
    %1122 = vmatprep.subr.bf16.mxu0 0
    %1123 = vmatpush1.bf16.msra.mxu0 0
    %1124 = vmatprep.subr.bf16.mxu0 0
    %1125 = vmatpush1.bf16.msra.mxu0 0
    %1126 = vmatprep.subr.bf16.mxu0 0
    %1127 = vmatpush1.bf16.msra.mxu0 0
    %1128 = vmatprep.mubr.bf16.mxu0 %v1091
    %1129 = vmatmul.mubr.bf16.gmra.mrb[0].mxu0 %v981
    %v1130 = vpop.f32.mrb[0].mxu0
    %v1131 = vadd.f32 %v1016, %v1130
    %v1132 = vpop.f32.mrb[0].mxu0
    %v1133 = vpop.f32.mrb[0].mxu0
    %v1134 = vadd.f32 %v1016, %v1133
    %v1135 = vpop.f32.mrb[0].mxu0
    %1136 = vmatprep.mubr.bf16.mxu0 %v1094
    %1137 = vmatmul.mubr.bf16.gmra.mrb[0].mxu0 %v983
    %v1138 = vpop.f32.mrb[0].mxu0
    %v1139 = vadd.f32 %v1016, %v1138
    %v1140 = vpop.f32.mrb[0].mxu0
    %v1141 = vpop.f32.mrb[0].mxu0
    %v1142 = vadd.f32 %v1016, %v1141
    %v1143 = vpop.f32.mrb[0].mxu0
    %1144 = vdwg.mxu0
    %vm1145 = vcmp.ge.f32.partialorder %v1131, 0.0
    %vm1146 = vcmp.ge.f32.partialorder %v1134, 0.0
    %vm1147 = vcmp.ge.f32.partialorder %v1139, 0.0
    %vm1148 = vcmp.ge.f32.partialorder %v1142, 0.0
    %v1149 = vmul.f32 %v1131, 0.01
    %v1150 = vmul.f32 %v1134, 0.01
    %v1151 = vmul.f32 %v1139, 0.01
    %v1152 = vmul.f32 %v1142, 0.01
    %v1153 = vsel %vm1145, %v1131, %v1149
    %v1154 = vsel %vm1146, %v1134, %v1150
    %v1155 = vsel %vm1147, %v1139, %v1151
    %v1156 = vsel %vm1148, %v1142, %v1152
    %1157 = vst.msk [vmem:[#allocation2 + $0x8] sm:$0xff] %vm38, %v1153
    %1158 = vst.msk [vmem:[#allocation2 + $0x10] sm:$0xff] %vm38, %v1154
    %1159 = vst.msk [vmem:[#allocation2 + $0x18] sm:$0xff] %vm38, %v1155
    %1160 = vst.msk [vmem:[#allocation2 + $0x20] sm:$0xff] %vm38, %v1156
    %v1161 = vld [vmem:[#allocation2 + $0x4] sm:$0xff]
    %v1162 = vld [vmem:[#allocation2 + $0xc] sm:$0xff]
    %v1163 = vld [vmem:[#allocation2 + $0x14] sm:$0xff]
    %v1164 = vld [vmem:[#allocation2 + $0x1c] sm:$0xff]
    %v1165 = vld [vmem:[#allocation2 + $0x24] sm:$0xff]
    %v1166 = vsel %vm945, %v1161, 0.0
    %v1167 = vsel %vm946, %v1162, 0.0
    %v1168 = vsel %vm947, %v1163, 0.0
    %v1169 = vsel %vm948, %v1164, 0.0
    %v1170 = vsel %vm953, %v1162, 0.0
    %v1171 = vsel %vm954, %v1163, 0.0
    %v1172 = vsel %vm955, %v1164, 0.0
    %v1173 = vsel %vm956, %v1165, 0.0
    %1178 = vrot.lane.b32.xlu0 %v1153, 64
    %v1179 = vpop.permute.xlu0 %1178
    %1180 = vrot.lane.b32.xlu0 %v1154, 64
    %v1181 = vpop.permute.xlu0 %1180
    %1182 = vrot.lane.b32.xlu0 %v1155, 64
    %v1183 = vpop.permute.xlu0 %1182
    %1184 = vrot.lane.b32.xlu0 %v1156, 64
    %v1185 = vpop.permute.xlu0 %1184
    %v1190 = vsel %vm38, %v1166, %v1179
    %v1191 = vsel %vm38, %v1167, %v1181
    %v1192 = vsel %vm38, %v1168, %v1183
    %v1193 = vsel %vm38, %v1169, %v1185
    %v1194 = vpack.c.bf16 %v1191, %v1190
    %v1195 = vpack.c.bf16 %v1171, %v1170
    %v1196 = vpack.c.bf16 %v1193, %v1192
    %v1197 = vpack.c.bf16 %v1173, %v1172
    %s1198 = scalar_lea.vmem [#allocation3], 480
    %v1199 = vld [vmem:[%s1198] sm:$0xf]
    %v1200 = vld [vmem:[%s1198 + $0x4] sm:$0xf]
    %v1201 = vld [vmem:[%s1198 + $0x8] sm:$0xf]
    %v1202 = vld [vmem:[%s1198 + $0xc] sm:$0xf]
    %v1203 = vld [vmem:[%s1198 + $0x10] sm:$0xf]
    %v1204 = vld [vmem:[%s1198 + $0x14] sm:$0xf]
    %v1205 = vld [vmem:[%s1198 + $0x18] sm:$0xf]
    %v1206 = vld [vmem:[%s1198 + $0x1c] sm:$0xf]
    %v1207 = vld [vmem:[%s1198 + $0x20] sm:$0xf]
    %v1208 = vld [vmem:[%s1198 + $0x24] sm:$0xf]
    %v1209 = vld [vmem:[%s1198 + $0x28] sm:$0xf]
    %v1210 = vld [vmem:[%s1198 + $0x2c] sm:$0xf]
    %v1211 = vld [vmem:[%s1198 + $0x30] sm:$0xf]
    %v1212 = vld [vmem:[%s1198 + $0x34] sm:$0xf]
    %v1213 = vld [vmem:[%s1198 + $0x38] sm:$0xf]
    %v1214 = vld [vmem:[%s1198 + $0x3c] sm:$0xf]
    %v1215 = vld [vmem:[%s1198 + $0x40] sm:$0xf]
    %v1216 = vld [vmem:[%s1198 + $0x44] sm:$0xf]
    %v1217 = vld [vmem:[%s1198 + $0x48] sm:$0xf]
    %v1218 = vld [vmem:[%s1198 + $0x4c] sm:$0xf]
    %v1219 = vld [vmem:[%s1198 + $0x50] sm:$0xf]
    %v1220 = vld [vmem:[%s1198 + $0x54] sm:$0xf]
    %v1221 = vld [vmem:[%s1198 + $0x58] sm:$0xf]
    %v1222 = vld [vmem:[%s1198 + $0x5c] sm:$0xf]
    %s1223 = scalar_lea.vmem %s2, 5
    %v1224 = vld [vmem:[%s1223] sm:$0x1]
    %v1226 = vlaneseq
    %v1227 = vshrl.u32 %v1226, 7
    %v1228 = vsub.s32 0, %v1227
    %v1229 = vrot.slane %v1224, %v1228
    %v1255 = vunpack.c.l.b16 %v1199
    %v1256 = vunpack.c.l.b16 %v1200
    %v1257 = vunpack.c.l.b16 %v1201
    %v1258 = vunpack.c.l.b16 %v1202
    %v1259 = vunpack.c.l.b16 %v1203
    %v1260 = vunpack.c.l.b16 %v1204
    %v1261 = vunpack.c.l.b16 %v1205
    %v1262 = vunpack.c.l.b16 %v1206
    %v1263 = vunpack.c.l.b16 %v1207
    %v1264 = vunpack.c.l.b16 %v1208
    %v1265 = vunpack.c.l.b16 %v1209
    %v1266 = vunpack.c.l.b16 %v1210
    %v1267 = vunpack.c.l.b16 %v1211
    %v1268 = vunpack.c.l.b16 %v1212
    %v1269 = vunpack.c.l.b16 %v1213
    %v1270 = vunpack.c.l.b16 %v1214
    %v1271 = vunpack.c.l.b16 %v1215
    %v1272 = vunpack.c.l.b16 %v1216
    %v1273 = vunpack.c.l.b16 %v1217
    %v1274 = vunpack.c.l.b16 %v1218
    %v1275 = vunpack.c.l.b16 %v1219
    %v1276 = vunpack.c.l.b16 %v1220
    %v1277 = vunpack.c.l.b16 %v1221
    %v1278 = vunpack.c.l.b16 %v1222
    %v1279 = vpack.c.b16 %v1256, %v1255
    %v1280 = vpack.c.b16 %v1258, %v1257
    %v1281 = vpack.c.b16 %v1260, %v1259
    %v1282 = vpack.c.b16 %v1262, %v1261
    %v1283 = vpack.c.b16 %v1264, %v1263
    %v1284 = vpack.c.b16 %v1266, %v1265
    %v1285 = vpack.c.b16 %v1268, %v1267
    %v1286 = vpack.c.b16 %v1270, %v1269
    %v1287 = vpack.c.b16 %v1272, %v1271
    %v1288 = vpack.c.b16 %v1274, %v1273
    %v1289 = vpack.c.b16 %v1276, %v1275
    %v1290 = vpack.c.b16 %v1278, %v1277
    %v1304 = vsel %vm38, %v1195, 0
    %v1307 = vsel %vm38, %v1197, 0
    %1309 = vmatprep.subr.bf16.mxu0 0
    %1310 = vmatpush1.bf16.msra.mxu0 %v1279
    %1311 = vmatprep.subr.bf16.mxu0 0
    %1312 = vmatpush1.bf16.msra.mxu0 %v1280
    %1313 = vmatprep.subr.bf16.mxu0 0
    %1314 = vmatpush1.bf16.msra.mxu0 %v1281
    %1315 = vmatprep.subr.bf16.mxu0 0
    %1316 = vmatpush1.bf16.msra.mxu0 %v1282
    %1317 = vmatprep.subr.bf16.mxu0 0
    %1318 = vmatpush1.bf16.msra.mxu0 %v1283
    %1319 = vmatprep.subr.bf16.mxu0 0
    %1320 = vmatpush1.bf16.msra.mxu0 %v1284
    %1321 = vmatprep.subr.bf16.mxu0 0
    %1322 = vmatpush1.bf16.msra.mxu0 %v1285
    %1323 = vmatprep.subr.bf16.mxu0 0
    %1324 = vmatpush1.bf16.msra.mxu0 %v1286
    %1325 = vmatprep.subr.bf16.mxu0 0
    %1326 = vmatpush1.bf16.msra.mxu0 %v1287
    %1327 = vmatprep.subr.bf16.mxu0 0
    %1328 = vmatpush1.bf16.msra.mxu0 %v1288
    %1329 = vmatprep.subr.bf16.mxu0 0
    %1330 = vmatpush1.bf16.msra.mxu0 %v1289
    %1331 = vmatprep.subr.bf16.mxu0 0
    %1332 = vmatpush1.bf16.msra.mxu0 %v1290
    %1333 = vmatprep.subr.bf16.mxu0 0
    %1334 = vmatpush1.bf16.msra.mxu0 0
    %1335 = vmatprep.subr.bf16.mxu0 0
    %1336 = vmatpush1.bf16.msra.mxu0 0
    %1337 = vmatprep.subr.bf16.mxu0 0
    %1338 = vmatpush1.bf16.msra.mxu0 0
    %1339 = vmatprep.subr.bf16.mxu0 0
    %1340 = vmatpush1.bf16.msra.mxu0 0
    %1341 = vmatprep.mubr.bf16.mxu0 %v1304
    %1342 = vmatmul.mubr.bf16.gmra.mrb[0].mxu0 %v1194
    %v1343 = vpop.f32.mrb[0].mxu0
    %v1344 = vadd.f32 %v1229, %v1343
    %v1345 = vpop.f32.mrb[0].mxu0
    %v1346 = vpop.f32.mrb[0].mxu0
    %v1347 = vadd.f32 %v1229, %v1346
    %v1348 = vpop.f32.mrb[0].mxu0
    %1349 = vmatprep.mubr.bf16.mxu0 %v1307
    %1350 = vmatmul.mubr.bf16.gmra.mrb[0].mxu0 %v1196
    %v1351 = vpop.f32.mrb[0].mxu0
    %v1352 = vadd.f32 %v1229, %v1351
    %v1353 = vpop.f32.mrb[0].mxu0
    %v1354 = vpop.f32.mrb[0].mxu0
    %v1355 = vadd.f32 %v1229, %v1354
    %v1356 = vpop.f32.mrb[0].mxu0
    %1357 = vdwg.mxu0
    %vm1358 = vcmp.ge.f32.partialorder %v1344, 0.0
    %vm1359 = vcmp.ge.f32.partialorder %v1347, 0.0
    %vm1360 = vcmp.ge.f32.partialorder %v1352, 0.0
    %vm1361 = vcmp.ge.f32.partialorder %v1355, 0.0
    %v1362 = vmul.f32 %v1344, 0.01
    %v1363 = vmul.f32 %v1347, 0.01
    %v1364 = vmul.f32 %v1352, 0.01
    %v1365 = vmul.f32 %v1355, 0.01
    %v1366 = vsel %vm1358, %v1344, %v1362
    %v1367 = vsel %vm1359, %v1347, %v1363
    %v1368 = vsel %vm1360, %v1352, %v1364
    %v1369 = vsel %vm1361, %v1355, %v1365
    %1370 = vst.msk [vmem:[#allocation2 + $0x8] sm:$0xff] %vm38, %v1366
    %1371 = vst.msk [vmem:[#allocation2 + $0x10] sm:$0xff] %vm38, %v1367
    %1372 = vst.msk [vmem:[#allocation2 + $0x18] sm:$0xff] %vm38, %v1368
    %1373 = vst.msk [vmem:[#allocation2 + $0x20] sm:$0xff] %vm38, %v1369
    %v1374 = vld [vmem:[#allocation2] sm:$0xff]
    %v1375 = vld [vmem:[#allocation2 + $0x8] sm:$0xff]
    %v1376 = vld [vmem:[#allocation2 + $0x10] sm:$0xff]
    %v1377 = vld [vmem:[#allocation2 + $0x18] sm:$0xff]
    %v1378 = vld [vmem:[#allocation2 + $0x20] sm:$0xff]
    %v1379 = vld [vmem:[#allocation2 + $0x28] sm:$0xff]
    %vm1380 = vcmp.ge.s32.totalorder %v50, 8
    %vm1381 = vcmp.ge.s32.totalorder %v51, 8
    %vm1382 = vcmp.ge.s32.totalorder %v52, 8
    %vm1383 = vcmp.ge.s32.totalorder %v53, 8
    %v1384 = vsel %vm1380, %v1374, 0.0
    %v1385 = vsel %vm1381, %v1375, 0.0
    %v1386 = vsel %vm1382, %v1376, 0.0
    %v1387 = vsel %vm1383, %v1377, 0.0
    %vm1388 = vcmp.lt.s32.totalorder %v50, 8
    %vm1389 = vcmp.lt.s32.totalorder %v51, 8
    %vm1390 = vcmp.lt.s32.totalorder %v52, 8
    %vm1391 = vcmp.lt.s32.totalorder %v53, 8
    %v1392 = vsel %vm1388, %v1376, 0.0
    %v1393 = vsel %vm1389, %v1377, 0.0
    %v1394 = vsel %vm1390, %v1378, 0.0
    %v1395 = vsel %vm1391, %v1379, 0.0
    %1400 = vrot.lane.b32.xlu0 %v1366, 64
    %v1401 = vpop.permute.xlu0 %1400
    %1402 = vrot.lane.b32.xlu0 %v1367, 64
    %v1403 = vpop.permute.xlu0 %1402
    %1404 = vrot.lane.b32.xlu0 %v1368, 64
    %v1405 = vpop.permute.xlu0 %1404
    %1406 = vrot.lane.b32.xlu0 %v1369, 64
    %v1407 = vpop.permute.xlu0 %1406
    %v1412 = vsel %vm38, %v1384, %v1401
    %v1413 = vsel %vm38, %v1385, %v1403
    %v1414 = vsel %vm38, %v1386, %v1405
    %v1415 = vsel %vm38, %v1387, %v1407
    %v1416 = vpack.c.bf16 %v1413, %v1412
    %v1417 = vpack.c.bf16 %v1393, %v1392
    %v1418 = vpack.c.bf16 %v1415, %v1414
    %v1419 = vpack.c.bf16 %v1395, %v1394
    %s1420 = scalar_lea.vmem [#allocation3], 576
    %v1421 = vld [vmem:[%s1420] sm:$0xf]
    %v1422 = vld [vmem:[%s1420 + $0x4] sm:$0xf]
    %v1423 = vld [vmem:[%s1420 + $0x8] sm:$0xf]
    %v1424 = vld [vmem:[%s1420 + $0xc] sm:$0xf]
    %v1425 = vld [vmem:[%s1420 + $0x10] sm:$0xf]
    %v1426 = vld [vmem:[%s1420 + $0x14] sm:$0xf]
    %v1427 = vld [vmem:[%s1420 + $0x18] sm:$0xf]
    %v1428 = vld [vmem:[%s1420 + $0x1c] sm:$0xf]
    %v1429 = vld [vmem:[%s1420 + $0x20] sm:$0xf]
    %v1430 = vld [vmem:[%s1420 + $0x24] sm:$0xf]
    %v1431 = vld [vmem:[%s1420 + $0x28] sm:$0xf]
    %v1432 = vld [vmem:[%s1420 + $0x2c] sm:$0xf]
    %v1433 = vld [vmem:[%s1420 + $0x30] sm:$0xf]
    %v1434 = vld [vmem:[%s1420 + $0x34] sm:$0xf]
    %v1435 = vld [vmem:[%s1420 + $0x38] sm:$0xf]
    %v1436 = vld [vmem:[%s1420 + $0x3c] sm:$0xf]
    %v1437 = vld [vmem:[%s1420 + $0x40] sm:$0xf]
    %v1438 = vld [vmem:[%s1420 + $0x44] sm:$0xf]
    %v1439 = vld [vmem:[%s1420 + $0x48] sm:$0xf]
    %v1440 = vld [vmem:[%s1420 + $0x4c] sm:$0xf]
    %v1441 = vld [vmem:[%s1420 + $0x50] sm:$0xf]
    %v1442 = vld [vmem:[%s1420 + $0x54] sm:$0xf]
    %v1443 = vld [vmem:[%s1420 + $0x58] sm:$0xf]
    %v1444 = vld [vmem:[%s1420 + $0x5c] sm:$0xf]
    %s1445 = scalar_lea.vmem %s2, 6
    %v1446 = vld [vmem:[%s1445] sm:$0x1]
    %v1448 = vlaneseq
    %v1449 = vshrl.u32 %v1448, 7
    %v1450 = vsub.s32 0, %v1449
    %v1451 = vrot.slane %v1446, %v1450
    %v1477 = vunpack.c.l.b16 %v1421
    %v1478 = vunpack.c.l.b16 %v1422
    %v1479 = vunpack.c.l.b16 %v1423
    %v1480 = vunpack.c.l.b16 %v1424
    %v1481 = vunpack.c.l.b16 %v1425
    %v1482 = vunpack.c.l.b16 %v1426
    %v1483 = vunpack.c.l.b16 %v1427
    %v1484 = vunpack.c.l.b16 %v1428
    %v1485 = vunpack.c.l.b16 %v1429
    %v1486 = vunpack.c.l.b16 %v1430
    %v1487 = vunpack.c.l.b16 %v1431
    %v1488 = vunpack.c.l.b16 %v1432
    %v1489 = vunpack.c.l.b16 %v1433
    %v1490 = vunpack.c.l.b16 %v1434
    %v1491 = vunpack.c.l.b16 %v1435
    %v1492 = vunpack.c.l.b16 %v1436
    %v1493 = vunpack.c.l.b16 %v1437
    %v1494 = vunpack.c.l.b16 %v1438
    %v1495 = vunpack.c.l.b16 %v1439
    %v1496 = vunpack.c.l.b16 %v1440
    %v1497 = vunpack.c.l.b16 %v1441
    %v1498 = vunpack.c.l.b16 %v1442
    %v1499 = vunpack.c.l.b16 %v1443
    %v1500 = vunpack.c.l.b16 %v1444
    %v1501 = vpack.c.b16 %v1478, %v1477
    %v1502 = vpack.c.b16 %v1480, %v1479
    %v1503 = vpack.c.b16 %v1482, %v1481
    %v1504 = vpack.c.b16 %v1484, %v1483
    %v1505 = vpack.c.b16 %v1486, %v1485
    %v1506 = vpack.c.b16 %v1488, %v1487
    %v1507 = vpack.c.b16 %v1490, %v1489
    %v1508 = vpack.c.b16 %v1492, %v1491
    %v1509 = vpack.c.b16 %v1494, %v1493
    %v1510 = vpack.c.b16 %v1496, %v1495
    %v1511 = vpack.c.b16 %v1498, %v1497
    %v1512 = vpack.c.b16 %v1500, %v1499
    %v1526 = vsel %vm38, %v1417, 0
    %v1529 = vsel %vm38, %v1419, 0
    %1531 = vmatprep.subr.bf16.mxu0 0
    %1532 = vmatpush1.bf16.msra.mxu0 %v1501
    %1533 = vmatprep.subr.bf16.mxu0 0
    %1534 = vmatpush1.bf16.msra.mxu0 %v1502
    %1535 = vmatprep.subr.bf16.mxu0 0
    %1536 = vmatpush1.bf16.msra.mxu0 %v1503
    %1537 = vmatprep.subr.bf16.mxu0 0
    %1538 = vmatpush1.bf16.msra.mxu0 %v1504
    %1539 = vmatprep.subr.bf16.mxu0 0
    %1540 = vmatpush1.bf16.msra.mxu0 %v1505
    %1541 = vmatprep.subr.bf16.mxu0 0
    %1542 = vmatpush1.bf16.msra.mxu0 %v1506
    %1543 = vmatprep.subr.bf16.mxu0 0
    %1544 = vmatpush1.bf16.msra.mxu0 %v1507
    %1545 = vmatprep.subr.bf16.mxu0 0
    %1546 = vmatpush1.bf16.msra.mxu0 %v1508
    %1547 = vmatprep.subr.bf16.mxu0 0
    %1548 = vmatpush1.bf16.msra.mxu0 %v1509
    %1549 = vmatprep.subr.bf16.mxu0 0
    %1550 = vmatpush1.bf16.msra.mxu0 %v1510
    %1551 = vmatprep.subr.bf16.mxu0 0
    %1552 = vmatpush1.bf16.msra.mxu0 %v1511
    %1553 = vmatprep.subr.bf16.mxu0 0
    %1554 = vmatpush1.bf16.msra.mxu0 %v1512
    %1555 = vmatprep.subr.bf16.mxu0 0
    %1556 = vmatpush1.bf16.msra.mxu0 0
    %1557 = vmatprep.subr.bf16.mxu0 0
    %1558 = vmatpush1.bf16.msra.mxu0 0
    %1559 = vmatprep.subr.bf16.mxu0 0
    %1560 = vmatpush1.bf16.msra.mxu0 0
    %1561 = vmatprep.subr.bf16.mxu0 0
    %1562 = vmatpush1.bf16.msra.mxu0 0
    %1563 = vmatprep.mubr.bf16.mxu0 %v1526
    %1564 = vmatmul.mubr.bf16.gmra.mrb[0].mxu0 %v1416
    %v1565 = vpop.f32.mrb[0].mxu0
    %v1566 = vadd.f32 %v1451, %v1565
    %v1567 = vpop.f32.mrb[0].mxu0
    %v1568 = vpop.f32.mrb[0].mxu0
    %v1569 = vadd.f32 %v1451, %v1568
    %v1570 = vpop.f32.mrb[0].mxu0
    %1571 = vmatprep.mubr.bf16.mxu0 %v1529
    %1572 = vmatmul.mubr.bf16.gmra.mrb[0].mxu0 %v1418
    %v1573 = vpop.f32.mrb[0].mxu0
    %v1574 = vadd.f32 %v1451, %v1573
    %v1575 = vpop.f32.mrb[0].mxu0
    %v1576 = vpop.f32.mrb[0].mxu0
    %v1577 = vadd.f32 %v1451, %v1576
    %v1578 = vpop.f32.mrb[0].mxu0
    %1579 = vdwg.mxu0
    %vm1580 = vcmp.ge.f32.partialorder %v1566, 0.0
    %vm1581 = vcmp.ge.f32.partialorder %v1569, 0.0
    %vm1582 = vcmp.ge.f32.partialorder %v1574, 0.0
    %vm1583 = vcmp.ge.f32.partialorder %v1577, 0.0
    %v1584 = vmul.f32 %v1566, 0.01
    %v1585 = vmul.f32 %v1569, 0.01
    %v1586 = vmul.f32 %v1574, 0.01
    %v1587 = vmul.f32 %v1577, 0.01
    %v1588 = vsel %vm1580, %v1566, %v1584
    %v1589 = vsel %vm1581, %v1569, %v1585
    %v1590 = vsel %vm1582, %v1574, %v1586
    %v1591 = vsel %vm1583, %v1577, %v1587
    %1592 = vst.msk [vmem:[#allocation2 + $0x8] sm:$0xff] %vm38, %v1588
    %1593 = vst.msk [vmem:[#allocation2 + $0x10] sm:$0xff] %vm38, %v1589
    %1594 = vst.msk [vmem:[#allocation2 + $0x18] sm:$0xff] %vm38, %v1590
    %1595 = vst.msk [vmem:[#allocation2 + $0x20] sm:$0xff] %vm38, %v1591
    %v1596 = vld [vmem:[#allocation2] sm:$0xff]
    %v1597 = vld [vmem:[#allocation2 + $0x8] sm:$0xff]
    %v1598 = vld [vmem:[#allocation2 + $0x10] sm:$0xff]
    %v1599 = vld [vmem:[#allocation2 + $0x18] sm:$0xff]
    %v1600 = vld [vmem:[#allocation2 + $0x20] sm:$0xff]
    %v1601 = vld [vmem:[#allocation2 + $0x28] sm:$0xff]
    %v1602 = vsel %vm1380, %v1596, 0.0
    %v1603 = vsel %vm1381, %v1597, 0.0
    %v1604 = vsel %vm1382, %v1598, 0.0
    %v1605 = vsel %vm1383, %v1599, 0.0
    %v1606 = vsel %vm1388, %v1598, 0.0
    %v1607 = vsel %vm1389, %v1599, 0.0
    %v1608 = vsel %vm1390, %v1600, 0.0
    %v1609 = vsel %vm1391, %v1601, 0.0
    %1614 = vrot.lane.b32.xlu0 %v1588, 64
    %v1615 = vpop.permute.xlu0 %1614
    %1616 = vrot.lane.b32.xlu0 %v1589, 64
    %v1617 = vpop.permute.xlu0 %1616
    %1618 = vrot.lane.b32.xlu0 %v1590, 64
    %v1619 = vpop.permute.xlu0 %1618
    %1620 = vrot.lane.b32.xlu0 %v1591, 64
    %v1621 = vpop.permute.xlu0 %1620
    %v1626 = vsel %vm38, %v1602, %v1615
    %v1627 = vsel %vm38, %v1603, %v1617
    %v1628 = vsel %vm38, %v1604, %v1619
    %v1629 = vsel %vm38, %v1605, %v1621
    %v1630 = vpack.c.bf16 %v1627, %v1626
    %v1631 = vpack.c.bf16 %v1607, %v1606
    %v1632 = vpack.c.bf16 %v1629, %v1628
    %v1633 = vpack.c.bf16 %v1609, %v1608
    %s1634 = scalar_lea.vmem [#allocation3], 672
    %v1635 = vld [vmem:[%s1634] sm:$0xf]
    %v1636 = vld [vmem:[%s1634 + $0x4] sm:$0xf]
    %v1637 = vld [vmem:[%s1634 + $0x8] sm:$0xf]
    %v1638 = vld [vmem:[%s1634 + $0xc] sm:$0xf]
    %v1639 = vld [vmem:[%s1634 + $0x10] sm:$0xf]
    %v1640 = vld [vmem:[%s1634 + $0x14] sm:$0xf]
    %v1641 = vld [vmem:[%s1634 + $0x18] sm:$0xf]
    %v1642 = vld [vmem:[%s1634 + $0x1c] sm:$0xf]
    %v1643 = vld [vmem:[%s1634 + $0x20] sm:$0xf]
    %v1644 = vld [vmem:[%s1634 + $0x24] sm:$0xf]
    %v1645 = vld [vmem:[%s1634 + $0x28] sm:$0xf]
    %v1646 = vld [vmem:[%s1634 + $0x2c] sm:$0xf]
    %v1647 = vld [vmem:[%s1634 + $0x30] sm:$0xf]
    %v1648 = vld [vmem:[%s1634 + $0x34] sm:$0xf]
    %v1649 = vld [vmem:[%s1634 + $0x38] sm:$0xf]
    %v1650 = vld [vmem:[%s1634 + $0x3c] sm:$0xf]
    %v1651 = vld [vmem:[%s1634 + $0x40] sm:$0xf]
    %v1652 = vld [vmem:[%s1634 + $0x44] sm:$0xf]
    %v1653 = vld [vmem:[%s1634 + $0x48] sm:$0xf]
    %v1654 = vld [vmem:[%s1634 + $0x4c] sm:$0xf]
    %v1655 = vld [vmem:[%s1634 + $0x50] sm:$0xf]
    %v1656 = vld [vmem:[%s1634 + $0x54] sm:$0xf]
    %v1657 = vld [vmem:[%s1634 + $0x58] sm:$0xf]
    %v1658 = vld [vmem:[%s1634 + $0x5c] sm:$0xf]
    %s1659 = scalar_lea.vmem %s2, 7
    %v1660 = vld [vmem:[%s1659] sm:$0x1]
    %v1662 = vlaneseq
    %v1663 = vshrl.u32 %v1662, 7
    %v1664 = vsub.s32 0, %v1663
    %v1665 = vrot.slane %v1660, %v1664
    %v1691 = vunpack.c.l.b16 %v1635
    %v1692 = vunpack.c.l.b16 %v1636
    %v1693 = vunpack.c.l.b16 %v1637
    %v1694 = vunpack.c.l.b16 %v1638
    %v1695 = vunpack.c.l.b16 %v1639
    %v1696 = vunpack.c.l.b16 %v1640
    %v1697 = vunpack.c.l.b16 %v1641
    %v1698 = vunpack.c.l.b16 %v1642
    %v1699 = vunpack.c.l.b16 %v1643
    %v1700 = vunpack.c.l.b16 %v1644
    %v1701 = vunpack.c.l.b16 %v1645
    %v1702 = vunpack.c.l.b16 %v1646
    %v1703 = vunpack.c.l.b16 %v1647
    %v1704 = vunpack.c.l.b16 %v1648
    %v1705 = vunpack.c.l.b16 %v1649
    %v1706 = vunpack.c.l.b16 %v1650
    %v1707 = vunpack.c.l.b16 %v1651
    %v1708 = vunpack.c.l.b16 %v1652
    %v1709 = vunpack.c.l.b16 %v1653
    %v1710 = vunpack.c.l.b16 %v1654
    %v1711 = vunpack.c.l.b16 %v1655
    %v1712 = vunpack.c.l.b16 %v1656
    %v1713 = vunpack.c.l.b16 %v1657
    %v1714 = vunpack.c.l.b16 %v1658
    %v1715 = vpack.c.b16 %v1692, %v1691
    %v1716 = vpack.c.b16 %v1694, %v1693
    %v1717 = vpack.c.b16 %v1696, %v1695
    %v1718 = vpack.c.b16 %v1698, %v1697
    %v1719 = vpack.c.b16 %v1700, %v1699
    %v1720 = vpack.c.b16 %v1702, %v1701
    %v1721 = vpack.c.b16 %v1704, %v1703
    %v1722 = vpack.c.b16 %v1706, %v1705
    %v1723 = vpack.c.b16 %v1708, %v1707
    %v1724 = vpack.c.b16 %v1710, %v1709
    %v1725 = vpack.c.b16 %v1712, %v1711
    %v1726 = vpack.c.b16 %v1714, %v1713
    %v1740 = vsel %vm38, %v1631, 0
    %v1743 = vsel %vm38, %v1633, 0
    %1745 = vmatprep.subr.bf16.mxu0 0
    %1746 = vmatpush1.bf16.msra.mxu0 %v1715
    %1747 = vmatprep.subr.bf16.mxu0 0
    %1748 = vmatpush1.bf16.msra.mxu0 %v1716
    %1749 = vmatprep.subr.bf16.mxu0 0
    %1750 = vmatpush1.bf16.msra.mxu0 %v1717
    %1751 = vmatprep.subr.bf16.mxu0 0
    %1752 = vmatpush1.bf16.msra.mxu0 %v1718
    %1753 = vmatprep.subr.bf16.mxu0 0
    %1754 = vmatpush1.bf16.msra.mxu0 %v1719
    %1755 = vmatprep.subr.bf16.mxu0 0
    %1756 = vmatpush1.bf16.msra.mxu0 %v1720
    %1757 = vmatprep.subr.bf16.mxu0 0
    %1758 = vmatpush1.bf16.msra.mxu0 %v1721
    %1759 = vmatprep.subr.bf16.mxu0 0
    %1760 = vmatpush1.bf16.msra.mxu0 %v1722
    %1761 = vmatprep.subr.bf16.mxu0 0
    %1762 = vmatpush1.bf16.msra.mxu0 %v1723
    %1763 = vmatprep.subr.bf16.mxu0 0
    %1764 = vmatpush1.bf16.msra.mxu0 %v1724
    %1765 = vmatprep.subr.bf16.mxu0 0
    %1766 = vmatpush1.bf16.msra.mxu0 %v1725
    %1767 = vmatprep.subr.bf16.mxu0 0
    %1768 = vmatpush1.bf16.msra.mxu0 %v1726
    %1769 = vmatprep.subr.bf16.mxu0 0
    %1770 = vmatpush1.bf16.msra.mxu0 0
    %1771 = vmatprep.subr.bf16.mxu0 0
    %1772 = vmatpush1.bf16.msra.mxu0 0
    %1773 = vmatprep.subr.bf16.mxu0 0
    %1774 = vmatpush1.bf16.msra.mxu0 0
    %1775 = vmatprep.subr.bf16.mxu0 0
    %1776 = vmatpush1.bf16.msra.mxu0 0
    %1777 = vmatprep.mubr.bf16.mxu0 %v1740
    %1778 = vmatmul.mubr.bf16.gmra.mrb[0].mxu0 %v1630
    %v1779 = vpop.f32.mrb[0].mxu0
    %v1780 = vadd.f32 %v1665, %v1779
    %v1781 = vpop.f32.mrb[0].mxu0
    %v1782 = vpop.f32.mrb[0].mxu0
    %v1783 = vadd.f32 %v1665, %v1782
    %v1784 = vpop.f32.mrb[0].mxu0
    %1785 = vmatprep.mubr.bf16.mxu0 %v1743
    %1786 = vmatmul.mubr.bf16.gmra.mrb[0].mxu0 %v1632
    %v1787 = vpop.f32.mrb[0].mxu0
    %v1788 = vadd.f32 %v1665, %v1787
    %v1789 = vpop.f32.mrb[0].mxu0
    %v1790 = vpop.f32.mrb[0].mxu0
    %v1791 = vadd.f32 %v1665, %v1790
    %v1792 = vpop.f32.mrb[0].mxu0
    %1793 = vdwg.mxu0
    %vm1794 = vcmp.ge.f32.partialorder %v1780, 0.0
    %vm1795 = vcmp.ge.f32.partialorder %v1783, 0.0
    %vm1796 = vcmp.ge.f32.partialorder %v1788, 0.0
    %vm1797 = vcmp.ge.f32.partialorder %v1791, 0.0
    %v1798 = vmul.f32 %v1780, 0.01
    %v1799 = vmul.f32 %v1783, 0.01
    %v1800 = vmul.f32 %v1788, 0.01
    %v1801 = vmul.f32 %v1791, 0.01
    %v1802 = vsel %vm1794, %v1780, %v1798
    %v1803 = vsel %vm1795, %v1783, %v1799
    %v1804 = vsel %vm1796, %v1788, %v1800
    %v1805 = vsel %vm1797, %v1791, %v1801
    %v1806 = vpack.c.bf16 %v1803, %v1802
    %v1807 = vpack.c.bf16 %v1805, %v1804
    %v1808 = vld [vmem:[%s3] sm:$0xf]
    %vm1809 = vcmask 261120
    %v1811 = vsel %vm1809, %v1808, 0
    %1813 = vmatprep.subr.bf16.mxu0 0
    %1814 = vmatpush1.bf16.msra.mxu0 %v1806
    %1815 = vmatprep.subr.bf16.mxu0 0
    %1816 = vmatpush1.bf16.msra.mxu0 %v1807
    %1817 = vmatprep.subr.bf16.mxu0 0
    %1818 = vmatpush1.bf16.msra.mxu0 0
    %1819 = vmatprep.subr.bf16.mxu0 0
    %1820 = vmatpush1.bf16.msra.mxu0 0
    %1821 = vmatprep.subr.bf16.mxu0 0
    %1822 = vmatpush1.bf16.msra.mxu0 0
    %1823 = vmatprep.subr.bf16.mxu0 0
    %1824 = vmatpush1.bf16.msra.mxu0 0
    %1825 = vmatprep.subr.bf16.mxu0 0
    %1826 = vmatpush1.bf16.msra.mxu0 0
    %1827 = vmatprep.subr.bf16.mxu0 0
    %1828 = vmatpush1.bf16.msra.mxu0 0
    %1829 = vmatprep.subr.bf16.mxu0 0
    %1830 = vmatpush1.bf16.msra.mxu0 0
    %1831 = vmatprep.subr.bf16.mxu0 0
    %1832 = vmatpush1.bf16.msra.mxu0 0
    %1833 = vmatprep.subr.bf16.mxu0 0
    %1834 = vmatpush1.bf16.msra.mxu0 0
    %1835 = vmatprep.subr.bf16.mxu0 0
    %1836 = vmatpush1.bf16.msra.mxu0 0
    %1837 = vmatprep.subr.bf16.mxu0 0
    %1838 = vmatpush1.bf16.msra.mxu0 0
    %1839 = vmatprep.subr.bf16.mxu0 0
    %1840 = vmatpush1.bf16.msra.mxu0 0
    %1841 = vmatprep.subr.bf16.mxu0 0
    %1842 = vmatpush1.bf16.msra.mxu0 0
    %1843 = vmatprep.subr.bf16.mxu0 0
    %1844 = vmatpush1.bf16.msra.mxu0 0
    %1845 = vmatprep.mubr.bf16.mxu0 0
    %1846 = vmatmul.mubr.bf16.gmra.mrb[0].mxu0 %v1811
    %v1847 = vpop.f32.mrb[0].mxu0
    %v1848 = vadd.f32 0.0, %v1847
    %v1849 = vpop.f32.mrb[0].mxu0
    %v1850 = vpop.f32.mrb[0].mxu0
    %v1851 = vpop.f32.mrb[0].mxu0
    %1852 = vdwg.mxu0
    %v1853 = vpack.c.bf16 %v1848, %v1848
    %v1854 = vld [vmem:[%s4] sm:$0xf]
    %v1855 = vld [vmem:[%s4 + $0x4] sm:$0xf]
    %v1856 = vld [vmem:[%s4 + $0x8] sm:$0xf]
    %v1857 = vld [vmem:[%s4 + $0xc] sm:$0xf]
    %v1858 = vld [vmem:[%s4 + $0x10] sm:$0xf]
    %v1859 = vld [vmem:[%s4 + $0x14] sm:$0xf]
    %v1860 = vld [vmem:[%s4 + $0x18] sm:$0xf]
    %v1861 = vld [vmem:[%s4 + $0x1c] sm:$0xf]
    %v1862 = vld [vmem:[%s5] sm:$0x1]
    %v1864 = vlaneseq
    %v1865 = vshrl.u32 %v1864, 7
    %v1866 = vsub.s32 0, %v1865
    %v1867 = vrot.slane %v1862, %v1866
    %v1877 = vunpack.c.l.b16 %v1854
    %v1878 = vunpack.c.l.b16 %v1855
    %v1879 = vunpack.c.l.b16 %v1856
    %v1880 = vunpack.c.l.b16 %v1857
    %v1881 = vunpack.c.l.b16 %v1858
    %v1882 = vunpack.c.l.b16 %v1859
    %v1883 = vunpack.c.l.b16 %v1860
    %v1884 = vunpack.c.l.b16 %v1861
    %v1885 = vpack.c.b16 %v1878, %v1877
    %v1886 = vpack.c.b16 %v1880, %v1879
    %v1887 = vpack.c.b16 %v1882, %v1881
    %v1888 = vpack.c.b16 %v1884, %v1883
    %v1894 = vsel %vm38, %v1853, 0
    %1896 = vmatprep.subr.bf16.mxu0 0
    %1897 = vmatpush1.bf16.msra.mxu0 %v1885
    %1898 = vmatprep.subr.bf16.mxu0 0
    %1899 = vmatpush1.bf16.msra.mxu0 %v1886
    %1900 = vmatprep.subr.bf16.mxu0 0
    %1901 = vmatpush1.bf16.msra.mxu0 %v1887
    %1902 = vmatprep.subr.bf16.mxu0 0
    %1903 = vmatpush1.bf16.msra.mxu0 %v1888
    %1904 = vmatprep.subr.bf16.mxu0 0
    %1905 = vmatpush1.bf16.msra.mxu0 0
    %1906 = vmatprep.subr.bf16.mxu0 0
    %1907 = vmatpush1.bf16.msra.mxu0 0
    %1908 = vmatprep.subr.bf16.mxu0 0
    %1909 = vmatpush1.bf16.msra.mxu0 0
    %1910 = vmatprep.subr.bf16.mxu0 0
    %1911 = vmatpush1.bf16.msra.mxu0 0
    %1912 = vmatprep.subr.bf16.mxu0 0
    %1913 = vmatpush1.bf16.msra.mxu0 0
    %1914 = vmatprep.subr.bf16.mxu0 0
    %1915 = vmatpush1.bf16.msra.mxu0 0
    %1916 = vmatprep.subr.bf16.mxu0 0
    %1917 = vmatpush1.bf16.msra.mxu0 0
    %1918 = vmatprep.subr.bf16.mxu0 0
    %1919 = vmatpush1.bf16.msra.mxu0 0
    %1920 = vmatprep.subr.bf16.mxu0 0
    %1921 = vmatpush1.bf16.msra.mxu0 0
    %1922 = vmatprep.subr.bf16.mxu0 0
    %1923 = vmatpush1.bf16.msra.mxu0 0
    %1924 = vmatprep.subr.bf16.mxu0 0
    %1925 = vmatpush1.bf16.msra.mxu0 0
    %1926 = vmatprep.subr.bf16.mxu0 0
    %1927 = vmatpush1.bf16.msra.mxu0 0
    %1928 = vmatprep.mubr.bf16.mxu0 0
    %1929 = vmatmul.mubr.bf16.gmra.mrb[0].mxu0 %v1894
    %v1930 = vpop.f32.mrb[0].mxu0
    %v1931 = vadd.f32 %v1867, %v1930
    %v1932 = vpop.f32.mrb[0].mxu0
    %v1933 = vpop.f32.mrb[0].mxu0
    %v1934 = vpop.f32.mrb[0].mxu0
    %1935 = vdwg.mxu0
    %1936 = vst [vmem:[%s6] sm:$0xff] %v1931
    // Predicated region
    $region30: #{forward.1} parent=1 // pred_check
      _
    $region31: #{forward.1} parent=1 // pred_check_branch
      %1938 = sbr.rel (0) target = $region33
    $region32: #{forward.1} parent=1 // pred_region
      _
    $region33: #{forward.1} parent=1 // pred_fallthru
      _
    // Predicated region
    $region34: #{forward.1} parent=1 // pred_check
      _
    $region35: #{forward.1} parent=1 // pred_check_branch
      %1940 = sbr.rel (0) target = $region37
    $region36: #{forward.1} parent=1 // pred_region
      _
    $region37: #{forward.1} parent=1 // pred_fallthru
      _
    %1941 = vsyncpa [#allocation4], 1

</llo_original>
